<compile_context>
chip_gen: v6e
topology: v6e:2x2x1
jax: 0.10.0
libtpu: 0.0.40
codegen_flags: <defaults>
</compile_context>

<pallas_src>
import jax
import jax.numpy as jnp
from jax.experimental import pallas as pl
from jax.experimental.pallas import tpu as pltpu

INPUT_LAYER = 32
HIDE_LAYERS = [16, 8, 16]
OUTPUT_LAYER = 32
LANE = 128            # TPU lane width; all padded feature dims are 128
MAX_BATCH_TILE = 1024  # rows of x per grid step (fits easily in VMEM)


def _round_up(n, m):
    return ((n + m - 1) // m) * m


def _ae_kernel(x_ref,
               w1_ref, b1_ref, w2_ref, b2_ref,
               w3_ref, b3_ref, w4_ref, b4_ref,
               enc_ref, dec_ref):
    """Whole 4-layer MLP chain on one batch tile, all resident in VMEM.

    All weight matrices are padded to 128-wide output (and 128-tall input for
    layers 2..4), so every intermediate and both outputs are lane-dense
    (last dim == 128) and every jnp.dot is a full 128-wide MXU pass.
    """
    x = x_ref[...]

    # ---- encoder ----
    h1 = jnp.dot(x, w1_ref[...], preferred_element_type=jnp.float32) + b1_ref[...]
    h1 = jnp.maximum(h1, 0.0)                                   # ReLU
    enc = jnp.dot(h1, w2_ref[...], preferred_element_type=jnp.float32) + b2_ref[...]
    enc = jnp.maximum(enc, 0.0)                                 # ReLU

    # ---- decoder ----
    h3 = jnp.dot(enc, w3_ref[...], preferred_element_type=jnp.float32) + b3_ref[...]
    h3 = jnp.maximum(h3, 0.0)                                   # ReLU
    dec = jnp.dot(h3, w4_ref[...], preferred_element_type=jnp.float32) + b4_ref[...]
    dec = jnp.tanh(dec)                                         # Tanh (tanh(0)=0 in pad cols)

    enc_ref[...] = enc.astype(enc_ref.dtype)   # (tile, 128) unmasked store
    dec_ref[...] = dec.astype(dec_ref.dtype)   # (tile, 128) unmasked store


def autoencoder_forward(x, params, *, max_batch_tile=MAX_BATCH_TILE):
    """params = dict of w1..w4 stored as (in, out) and b1..b4 as (1, out)."""
    B, F = x.shape
    assert F == INPUT_LAYER
    d1, d2, d3 = HIDE_LAYERS
    d4 = OUTPUT_LAYER

    # --- zero-pad all weight/bias feature dims to the 128-lane width ---------
    # (one-time XLA pads outside the kernel; padded rows/cols are zero so the
    #  math inside the kernel is exact and pad columns of enc/dec stay zero).
    w1 = jnp.pad(params["w1"], ((0, 0), (0, LANE - d1)))
    b1 = jnp.pad(params["b1"], ((0, 0), (0, LANE - d1)))
    w2 = jnp.pad(params["w2"], ((0, LANE - d1), (0, LANE - d2)))
    b2 = jnp.pad(params["b2"], ((0, 0), (0, LANE - d2)))
    w3 = jnp.pad(params["w3"], ((0, LANE - d2), (0, LANE - d3)))
    b3 = jnp.pad(params["b3"], ((0, 0), (0, LANE - d3)))
    w4 = jnp.pad(params["w4"], ((0, LANE - d3), (0, LANE - d4)))
    b4 = jnp.pad(params["b4"], ((0, 0), (0, LANE - d4)))
    ordered = [w1, b1, w2, b2, w3, b3, w4, b4]

    # --- batch tiling: big tiles, pad batch up to a multiple of the tile -----
    tile = min(max_batch_tile, _round_up(B, 8))
    Bp = _round_up(B, tile)
    x_p = x if Bp == B else jnp.pad(x, ((0, Bp - B), (0, 0)))
    grid = (Bp // tile,)

    def const_spec(arr):
        # Same full block every grid step -> Pallas pipeline DMAs it only once
        # (block index never changes), so weights are not re-fetched per step.
        return pl.BlockSpec(arr.shape, lambda i: (0,) * arr.ndim)

    x_spec = pl.BlockSpec((tile, F), lambda i: (i, 0))
    enc_spec = pl.BlockSpec((tile, LANE), lambda i: (i, 0))
    dec_spec = pl.BlockSpec((tile, LANE), lambda i: (i, 0))

    enc_pad, dec_pad = pl.pallas_call(
        _ae_kernel,
        grid=grid,
        in_specs=[x_spec] + [const_spec(a) for a in ordered],
        out_specs=(enc_spec, dec_spec),
        out_shape=(
            jax.ShapeDtypeStruct((Bp, LANE), jnp.float32),
            jax.ShapeDtypeStruct((Bp, LANE), jnp.float32),
        ),
        compiler_params=pltpu.CompilerParams(
            dimension_semantics=("parallel",)),
    )(x_p, *ordered)

    # Slice the lane padding (and batch padding) back off outside the kernel.
    enc = enc_pad[:B, :d2]
    dec = dec_pad[:B, :d4]
    return enc, dec


def init_params(key):
    """Deterministic init mimicking nn.Linear's U(-1/sqrt(fan_in), 1/sqrt(fan_in))."""
    dims = [INPUT_LAYER, HIDE_LAYERS[0], HIDE_LAYERS[1], HIDE_LAYERS[2], OUTPUT_LAYER]
    params = {}
    keys = jax.random.split(key, 2 * (len(dims) - 1))
    for li in range(len(dims) - 1):
        fan_in, fan_out = dims[li], dims[li + 1]
        bound = 1.0 / jnp.sqrt(jnp.float32(fan_in))
        w = jax.random.uniform(keys[2 * li], (fan_in, fan_out),
                               jnp.float32, -bound, bound)
        b = jax.random.uniform(keys[2 * li + 1], (1, fan_out),
                               jnp.float32, -bound, bound)
        params[f"w{li + 1}"] = w
        params[f"b{li + 1}"] = b
    return params


def reference_forward(x, params):
    """Pure-JAX reference of the same forward pass."""
    h = jnp.maximum(x @ params["w1"] + params["b1"], 0.0)
    enc = jnp.maximum(h @ params["w2"] + params["b2"], 0.0)
    h = jnp.maximum(enc @ params["w3"] + params["b3"], 0.0)
    dec = jnp.tanh(h @ params["w4"] + params["b4"])
    return enc, dec


if __name__ == "__main__":
    key = jax.random.PRNGKey(0)
    k_x, k_p = jax.random.split(key)

    BATCH = 256  # small example batch; kernel handles any B (pads to tile)
    x = jax.random.normal(k_x, (BATCH, INPUT_LAYER), jnp.float32)
    params = init_params(k_p)

    # is_denoising=False in this config, so forward is just encoder+decoder.
    # TODO(synk): denoising branch (elementwise multiply by a U(0, 1-rate)
    #             random mask) omitted since is_denoising defaults to False.
    enc, dec = jax.block_until_ready(autoencoder_forward(x, params))

    enc_ref, dec_ref = reference_forward(x, params)
    assert enc.shape == (BATCH, HIDE_LAYERS[1])
    assert dec.shape == (BATCH, OUTPUT_LAYER)
    assert jnp.allclose(enc, enc_ref, atol=1e-5, rtol=1e-5)
    assert jnp.allclose(dec, dec_ref, atol=1e-5, rtol=1e-5)

    print("KERNEL_OK")
</pallas_src>

<mosaic_0001>
module attributes {stable_mosaic.version = 11 : i64} {
  func.func @_ae_kernel(%arg0: i32, %arg1: memref<256x32xf32, #tpu.memory_space<vmem>>, %arg2: memref<32x128xf32, #tpu.memory_space<vmem>>, %arg3: memref<1x128xf32, #tpu.memory_space<vmem>>, %arg4: memref<128x128xf32, #tpu.memory_space<vmem>>, %arg5: memref<1x128xf32, #tpu.memory_space<vmem>>, %arg6: memref<128x128xf32, #tpu.memory_space<vmem>>, %arg7: memref<1x128xf32, #tpu.memory_space<vmem>>, %arg8: memref<128x128xf32, #tpu.memory_space<vmem>>, %arg9: memref<1x128xf32, #tpu.memory_space<vmem>>, %arg10: memref<256x128xf32, #tpu.memory_space<vmem>>, %arg11: memref<256x128xf32, #tpu.memory_space<vmem>>) attributes {dimension_semantics = [#tpu.dimension_semantics<parallel>], iteration_bounds = array<i64: 1>, scalar_prefetch = 0 : i64, scratch_operands = 0 : i64, tpu.core_type = #tpu.core_type<tc>, window_params = [{transform_indices = @transform_0, window_bounds = array<i64: 256, 32>}, {pipeline_mode = #tpu.pipeline_mode<synchronous>, transform_indices = @transform_1, window_bounds = array<i64: 32, 128>}, {pipeline_mode = #tpu.pipeline_mode<synchronous>, transform_indices = @transform_2, window_bounds = array<i64: 1, 128>}, {pipeline_mode = #tpu.pipeline_mode<synchronous>, transform_indices = @transform_3, window_bounds = array<i64: 128, 128>}, {pipeline_mode = #tpu.pipeline_mode<synchronous>, transform_indices = @transform_4, window_bounds = array<i64: 1, 128>}, {pipeline_mode = #tpu.pipeline_mode<synchronous>, transform_indices = @transform_5, window_bounds = array<i64: 128, 128>}, {pipeline_mode = #tpu.pipeline_mode<synchronous>, transform_indices = @transform_6, window_bounds = array<i64: 1, 128>}, {pipeline_mode = #tpu.pipeline_mode<synchronous>, transform_indices = @transform_7, window_bounds = array<i64: 128, 128>}, {pipeline_mode = #tpu.pipeline_mode<synchronous>, transform_indices = @transform_8, window_bounds = array<i64: 1, 128>}, {transform_indices = @transform_9, window_bounds = array<i64: 256, 128>}, {transform_indices = @transform_10, window_bounds = array<i64: 256, 128>}]} {
    %c0 = arith.constant 0 : index
    %c0_0 = arith.constant 0 : index
    %0 = vector.load %arg1[%c0, %c0_0] : memref<256x32xf32, #tpu.memory_space<vmem>>, vector<256x32xf32>
    %c0_1 = arith.constant 0 : index
    %c0_2 = arith.constant 0 : index
    %1 = vector.load %arg2[%c0_1, %c0_2] : memref<32x128xf32, #tpu.memory_space<vmem>>, vector<32x128xf32>
    %cst = arith.constant dense<0.000000e+00> : vector<256x128xf32>
    %2 = tpu.matmul %0, %1, %cst {dimension_numbers = #tpu.dot_dimension_numbers<[1], [0], [0], [1], [0, 0, 1, 1], [], []>} : vector<256x32xf32>, vector<32x128xf32>, vector<256x128xf32> -> vector<256x128xf32>
    %c0_3 = arith.constant 0 : index
    %c0_4 = arith.constant 0 : index
    %3 = vector.load %arg3[%c0_3, %c0_4] : memref<1x128xf32, #tpu.memory_space<vmem>>, vector<1x128xf32>
    %4 = vector.broadcast %3 : vector<1x128xf32> to vector<256x128xf32>
    %5 = arith.addf %2, %4 : vector<256x128xf32>
    %cst_5 = arith.constant 0.000000e+00 : f32
    %6 = vector.broadcast %cst_5 : f32 to vector<256x128xf32>
    %7 = arith.maximumf %5, %6 : vector<256x128xf32>
    %c0_6 = arith.constant 0 : index
    %c0_7 = arith.constant 0 : index
    %8 = vector.load %arg4[%c0_6, %c0_7] : memref<128x128xf32, #tpu.memory_space<vmem>>, vector<128x128xf32>
    %cst_8 = arith.constant dense<0.000000e+00> : vector<256x128xf32>
    %9 = tpu.matmul %7, %8, %cst_8 {dimension_numbers = #tpu.dot_dimension_numbers<[1], [0], [0], [1], [0, 0, 1, 1], [], []>} : vector<256x128xf32>, vector<128x128xf32>, vector<256x128xf32> -> vector<256x128xf32>
    %c0_9 = arith.constant 0 : index
    %c0_10 = arith.constant 0 : index
    %10 = vector.load %arg5[%c0_9, %c0_10] : memref<1x128xf32, #tpu.memory_space<vmem>>, vector<1x128xf32>
    %11 = vector.broadcast %10 : vector<1x128xf32> to vector<256x128xf32>
    %12 = arith.addf %9, %11 : vector<256x128xf32>
    %cst_11 = arith.constant 0.000000e+00 : f32
    %13 = vector.broadcast %cst_11 : f32 to vector<256x128xf32>
    %14 = arith.maximumf %12, %13 : vector<256x128xf32>
    %c0_12 = arith.constant 0 : index
    %c0_13 = arith.constant 0 : index
    %15 = vector.load %arg6[%c0_12, %c0_13] : memref<128x128xf32, #tpu.memory_space<vmem>>, vector<128x128xf32>
    %cst_14 = arith.constant dense<0.000000e+00> : vector<256x128xf32>
    %16 = tpu.matmul %14, %15, %cst_14 {dimension_numbers = #tpu.dot_dimension_numbers<[1], [0], [0], [1], [0, 0, 1, 1], [], []>} : vector<256x128xf32>, vector<128x128xf32>, vector<256x128xf32> -> vector<256x128xf32>
    %c0_15 = arith.constant 0 : index
    %c0_16 = arith.constant 0 : index
    %17 = vector.load %arg7[%c0_15, %c0_16] : memref<1x128xf32, #tpu.memory_space<vmem>>, vector<1x128xf32>
    %18 = vector.broadcast %17 : vector<1x128xf32> to vector<256x128xf32>
    %19 = arith.addf %16, %18 : vector<256x128xf32>
    %cst_17 = arith.constant 0.000000e+00 : f32
    %20 = vector.broadcast %cst_17 : f32 to vector<256x128xf32>
    %21 = arith.maximumf %19, %20 : vector<256x128xf32>
    %c0_18 = arith.constant 0 : index
    %c0_19 = arith.constant 0 : index
    %22 = vector.load %arg8[%c0_18, %c0_19] : memref<128x128xf32, #tpu.memory_space<vmem>>, vector<128x128xf32>
    %cst_20 = arith.constant dense<0.000000e+00> : vector<256x128xf32>
    %23 = tpu.matmul %21, %22, %cst_20 {dimension_numbers = #tpu.dot_dimension_numbers<[1], [0], [0], [1], [0, 0, 1, 1], [], []>} : vector<256x128xf32>, vector<128x128xf32>, vector<256x128xf32> -> vector<256x128xf32>
    %c0_21 = arith.constant 0 : index
    %c0_22 = arith.constant 0 : index
    %24 = vector.load %arg9[%c0_21, %c0_22] : memref<1x128xf32, #tpu.memory_space<vmem>>, vector<1x128xf32>
    %25 = vector.broadcast %24 : vector<1x128xf32> to vector<256x128xf32>
    %26 = arith.addf %23, %25 : vector<256x128xf32>
    %27 = math.tanh %26 : vector<256x128xf32>
    %c0_23 = arith.constant 0 : index
    %c0_24 = arith.constant 0 : index
    %28 = vector.load %arg10[%c0_23, %c0_24] : memref<256x128xf32, #tpu.memory_space<vmem>>, vector<256x128xf32>
    tpu.vector_store %arg10[%c0_23, %c0_24], %14 {strides = array<i32>} : memref<256x128xf32, #tpu.memory_space<vmem>>, vector<256x128xf32>,
    %c0_25 = arith.constant 0 : index
    %c0_26 = arith.constant 0 : index
    %29 = vector.load %arg11[%c0_25, %c0_26] : memref<256x128xf32, #tpu.memory_space<vmem>>, vector<256x128xf32>
    tpu.vector_store %arg11[%c0_25, %c0_26], %27 {strides = array<i32>} : memref<256x128xf32, #tpu.memory_space<vmem>>, vector<256x128xf32>,
    return
  }
  func.func @transform_0(%arg0: i32) -> (i32, i32) {
    %c0_i32 = arith.constant 0 : i32
    %c0_i32_0 = arith.constant 0 : i32
    return %arg0, %c0_i32 : i32, i32
  }
  func.func @transform_1(%arg0: i32) -> (i32, i32) {
    %c0_i32 = arith.constant 0 : i32
    %c0_i32_0 = arith.constant 0 : i32
    %c0_i32_1 = arith.constant 0 : i32
    return %c0_i32, %c0_i32_0 : i32, i32
  }
  func.func @transform_2(%arg0: i32) -> (i32, i32) {
    %c0_i32 = arith.constant 0 : i32
    %c0_i32_0 = arith.constant 0 : i32
    %c0_i32_1 = arith.constant 0 : i32
    return %c0_i32, %c0_i32_0 : i32, i32
  }
  func.func @transform_3(%arg0: i32) -> (i32, i32) {
    %c0_i32 = arith.constant 0 : i32
    %c0_i32_0 = arith.constant 0 : i32
    %c0_i32_1 = arith.constant 0 : i32
    return %c0_i32, %c0_i32_0 : i32, i32
  }
  func.func @transform_4(%arg0: i32) -> (i32, i32) {
    %c0_i32 = arith.constant 0 : i32
    %c0_i32_0 = arith.constant 0 : i32
    %c0_i32_1 = arith.constant 0 : i32
    return %c0_i32, %c0_i32_0 : i32, i32
  }
  func.func @transform_5(%arg0: i32) -> (i32, i32) {
    %c0_i32 = arith.constant 0 : i32
    %c0_i32_0 = arith.constant 0 : i32
    %c0_i32_1 = arith.constant 0 : i32
    return %c0_i32, %c0_i32_0 : i32, i32
  }
  func.func @transform_6(%arg0: i32) -> (i32, i32) {
    %c0_i32 = arith.constant 0 : i32
    %c0_i32_0 = arith.constant 0 : i32
    %c0_i32_1 = arith.constant 0 : i32
    return %c0_i32, %c0_i32_0 : i32, i32
  }
  func.func @transform_7(%arg0: i32) -> (i32, i32) {
    %c0_i32 = arith.constant 0 : i32
    %c0_i32_0 = arith.constant 0 : i32
    %c0_i32_1 = arith.constant 0 : i32
    return %c0_i32, %c0_i32_0 : i32, i32
  }
  func.func @transform_8(%arg0: i32) -> (i32, i32) {
    %c0_i32 = arith.constant 0 : i32
    %c0_i32_0 = arith.constant 0 : i32
    %c0_i32_1 = arith.constant 0 : i32
    return %c0_i32, %c0_i32_0 : i32, i32
  }
  func.func @transform_9(%arg0: i32) -> (i32, i32) {
    %c0_i32 = arith.constant 0 : i32
    %c0_i32_0 = arith.constant 0 : i32
    return %arg0, %c0_i32 : i32, i32
  }
  func.func @transform_10(%arg0: i32) -> (i32, i32) {
    %c0_i32 = arith.constant 0 : i32
    %c0_i32_0 = arith.constant 0 : i32
    return %arg0, %c0_i32 : i32, i32
  }
}

</mosaic_0001>

<llo_original>
// kernel: tpu_custom_call.1
$region0: #{tpu_custom_call.1}
  #allocation0 [shape = 'u32[]', space=smem, size = 0x4, offset = 0x4, fixed_abs, tag = 'smem constant byte address 0x4 - core index']
  #allocation1 [shape = 'u32[144,128]{1,0:T(1,128)}', space=vmem, size = 0x12000, scoped, tag = 'internal scratch']
  %s0 = inlined_call_operand.vmem [shape: f32[256,32], index: 0, kind: input, shape index: {}]
  %s1 = inlined_call_operand.vmem [shape: f32[32,128], index: 1, kind: input, shape index: {}]
  %s2 = inlined_call_operand.vmem [shape: f32[1,128], index: 2, kind: input, shape index: {}]
  %s3 = inlined_call_operand.vmem [shape: f32[128,128], index: 3, kind: input, shape index: {}]
  %s4 = inlined_call_operand.vmem [shape: f32[1,128], index: 4, kind: input, shape index: {}]
  %s5 = inlined_call_operand.vmem [shape: f32[128,128], index: 5, kind: input, shape index: {}]
  %s6 = inlined_call_operand.vmem [shape: f32[1,128], index: 6, kind: input, shape index: {}]
  %s7 = inlined_call_operand.hbm [shape: f32[128,128], index: 7, kind: input, shape index: {}]
  %s8 = inlined_call_operand.vmem [shape: f32[1,128], index: 8, kind: input, shape index: {}]
  %s9 = inlined_call_operand.hbm [shape: f32[256,128], index: 9, kind: output, shape index: {0}]
  %s10 = inlined_call_operand.hbm [shape: f32[256,128], index: 10, kind: output, shape index: {1}]
  %11 = xla_tuple %s9, %s10
  %s12 = sld [smem:[#allocation0]]
  $region58: #{tpu_custom_call.1} parent=0
    _
  %s14 = ssub.s32 1, %s12
  %s15 = scalar_select 0, %s14, %s12
  $region1: #{tpu_custom_call.1} parent=0
    #allocation2 [shape = 'u8[65536]{0}', space=vmem, size = 0x10000, scoped, tag = 'input window, operand 7, single buffered']
    #allocation3 [shape = 's32[1]{0}', space=sflag, size = 0x4, scoped, tag = 'scoped memory for tpu_custom_call.1']
    #allocation4 [shape = 's32[1]{0}', space=sflag, size = 0x4, scoped, tag = 'scoped memory for tpu_custom_call.1']
    #allocation5 [shape = 'u8[131072]{0}', space=vmem, size = 0x20000, scoped, tag = 'output window, operand 0, single buffered']
    #allocation6 [shape = 'u8[131072]{0}', space=vmem, size = 0x20000, scoped, tag = 'output window, operand 1, single buffered']
    #allocation7 [shape = 's32[1]{0}', space=sflag, size = 0x4, scoped, tag = 'scoped memory for tpu_custom_call.1']
    %16 = vsyncpa [#allocation3], 0
    %17 = vsyncpa [#allocation4], 0
    %18 = vsyncpa [#allocation7], 0
    // Predicated region
    $region2: #{tpu_custom_call.1} parent=1 // pred_check
      _
    $region3: #{tpu_custom_call.1} parent=1 // pred_check_branch
      %20 = sbr.rel (0) target = $region5
    $region4: #{tpu_custom_call.1} parent=1 // pred_region
      _
    $region5: #{tpu_custom_call.1} parent=1 // pred_fallthru
      _
    // Predicated region
    $region6: #{tpu_custom_call.1} parent=1 // pred_check
      _
    $region7: #{tpu_custom_call.1} parent=1 // pred_check_branch
      %22 = sbr.rel (0) target = $region9
    $region8: #{tpu_custom_call.1} parent=1 // pred_region
      _
    $region9: #{tpu_custom_call.1} parent=1 // pred_fallthru
      _
    // Predicated region
    $region10: #{tpu_custom_call.1} parent=1 // pred_check
      _
    $region11: #{tpu_custom_call.1} parent=1 // pred_check_branch
      %24 = sbr.rel (0) target = $region13
    $region12: #{tpu_custom_call.1} parent=1 // pred_region
      _
    $region13: #{tpu_custom_call.1} parent=1 // pred_fallthru
      _
    // Predicated region
    $region14: #{tpu_custom_call.1} parent=1 // pred_check
      _
    $region15: #{tpu_custom_call.1} parent=1 // pred_check_branch
      %26 = sbr.rel (0) target = $region17
    $region16: #{tpu_custom_call.1} parent=1 // pred_region
      _
    $region17: #{tpu_custom_call.1} parent=1 // pred_fallthru
      _
    // Predicated region
    $region18: #{tpu_custom_call.1} parent=1 // pred_check
      _
    $region19: #{tpu_custom_call.1} parent=1 // pred_check_branch
      %28 = sbr.rel (0) target = $region21
    $region20: #{tpu_custom_call.1} parent=1 // pred_region
      _
    $region21: #{tpu_custom_call.1} parent=1 // pred_fallthru
      _
    // Predicated region
    $region22: #{tpu_custom_call.1} parent=1 // pred_check
      _
    $region23: #{tpu_custom_call.1} parent=1 // pred_check_branch
      %30 = sbr.rel (0) target = $region25
    $region24: #{tpu_custom_call.1} parent=1 // pred_region
      _
    $region25: #{tpu_custom_call.1} parent=1 // pred_fallthru
      _
    // Predicated region
    $region26: #{tpu_custom_call.1} parent=1 // pred_check
      _
    $region27: #{tpu_custom_call.1} parent=1 // pred_check_branch
      %32 = sbr.rel (0) target = $region29
    $region28: #{tpu_custom_call.1} parent=1 // pred_region
      _
    $region29: #{tpu_custom_call.1} parent=1 // pred_fallthru
      _
    // Predicated region
    $region30: #{tpu_custom_call.1} parent=1 // pred_check
      _
    $region31: #{tpu_custom_call.1} parent=1 // pred_check_branch
      %34 = sbr.rel (0) target = $region33
    $region32: #{tpu_custom_call.1} parent=1 // pred_region
      %s36 = ssub.s32 2048, 2048
      %37 = vsyncadd [#allocation3], %s36
      %s38 = sshll.u32 [#allocation2], 4
      %s39 = int_to_ptr.vmem [resolvable:$true] %s38
      %44 = dma.hbm_to_vmem [thread:$0]  %s7, 2048, %s39, [#allocation3], 128, 128, 8
    $region33: #{tpu_custom_call.1} parent=1 // pred_fallthru
      _
    // Predicated region
    $region34: #{tpu_custom_call.1} parent=1 // pred_check
      _
    $region35: #{tpu_custom_call.1} parent=1 // pred_check_branch
      %46 = sbr.rel (0) target = $region37
    $region36: #{tpu_custom_call.1} parent=1 // pred_region
      _
    $region37: #{tpu_custom_call.1} parent=1 // pred_fallthru
      _
    // Predicated region
    $region38: #{tpu_custom_call.1} parent=1 // pred_check
      _
    $region39: #{tpu_custom_call.1} parent=1 // pred_check_branch
      %48 = sbr.rel (0) target = $region41
    $region40: #{tpu_custom_call.1} parent=1 // pred_region
      %49 = dma.done [#allocation3], 2048
    $region41: #{tpu_custom_call.1} parent=1 // pred_fallthru
      _
    %v50 = vld [vmem:[%s0] sm:$0xff]
    %v51 = vld [vmem:[%s0 + $0x8] sm:$0xff]
    %v52 = vld [vmem:[%s0 + $0x10] sm:$0xff]
    %v53 = vld [vmem:[%s0 + $0x18] sm:$0xff]
    %v54 = vld [vmem:[%s0 + $0x20] sm:$0xff]
    %v55 = vld [vmem:[%s0 + $0x28] sm:$0xff]
    %v56 = vld [vmem:[%s0 + $0x30] sm:$0xff]
    %v57 = vld [vmem:[%s0 + $0x38] sm:$0xff]
    %v58 = vld [vmem:[%s0 + $0x40] sm:$0xff]
    %v59 = vld [vmem:[%s0 + $0x48] sm:$0xff]
    %v60 = vld [vmem:[%s0 + $0x50] sm:$0xff]
    %v61 = vld [vmem:[%s0 + $0x58] sm:$0xff]
    %v62 = vld [vmem:[%s0 + $0x60] sm:$0xff]
    %v63 = vld [vmem:[%s0 + $0x68] sm:$0xff]
    %v64 = vld [vmem:[%s0 + $0x70] sm:$0xff]
    %v65 = vld [vmem:[%s0 + $0x78] sm:$0xff]
    %v66 = vld [vmem:[%s0 + $0x80] sm:$0xff]
    %v67 = vld [vmem:[%s0 + $0x88] sm:$0xff]
    %v68 = vld [vmem:[%s0 + $0x90] sm:$0xff]
    %v69 = vld [vmem:[%s0 + $0x98] sm:$0xff]
    %v70 = vld [vmem:[%s0 + $0xa0] sm:$0xff]
    %v71 = vld [vmem:[%s0 + $0xa8] sm:$0xff]
    %v72 = vld [vmem:[%s0 + $0xb0] sm:$0xff]
    %v73 = vld [vmem:[%s0 + $0xb8] sm:$0xff]
    %v74 = vld [vmem:[%s0 + $0xc0] sm:$0xff]
    %v75 = vld [vmem:[%s0 + $0xc8] sm:$0xff]
    %v76 = vld [vmem:[%s0 + $0xd0] sm:$0xff]
    %v77 = vld [vmem:[%s0 + $0xd8] sm:$0xff]
    %v78 = vld [vmem:[%s0 + $0xe0] sm:$0xff]
    %v79 = vld [vmem:[%s0 + $0xe8] sm:$0xff]
    %v80 = vld [vmem:[%s0 + $0xf0] sm:$0xff]
    %v81 = vld [vmem:[%s0 + $0xf8] sm:$0xff]
    %v82 = vld [vmem:[%s1] sm:$0xff]
    %v83 = vld [vmem:[%s1 + $0x8] sm:$0xff]
    %v84 = vld [vmem:[%s1 + $0x10] sm:$0xff]
    %v85 = vld [vmem:[%s1 + $0x18] sm:$0xff]
    %v86 = vld [vmem:[%s2] sm:$0x1]
    %v88 = vlaneseq
    %v89 = vshrl.u32 %v88, 7
    %v90 = vsub.s32 0, %v89
    %v91 = vrot.slane %v86, %v90
    %vm93 = vcmask 261120
    %v95 = vsel %vm93, %v50, 0
    %v98 = vsel %vm93, %v51, 0
    %v101 = vsel %vm93, %v52, 0
    %v104 = vsel %vm93, %v53, 0
    %v107 = vsel %vm93, %v54, 0
    %v110 = vsel %vm93, %v55, 0
    %v113 = vsel %vm93, %v56, 0
    %v116 = vsel %vm93, %v57, 0
    %v119 = vsel %vm93, %v58, 0
    %v122 = vsel %vm93, %v59, 0
    %v125 = vsel %vm93, %v60, 0
    %v128 = vsel %vm93, %v61, 0
    %v131 = vsel %vm93, %v62, 0
    %v134 = vsel %vm93, %v63, 0
    %v137 = vsel %vm93, %v64, 0
    %v140 = vsel %vm93, %v65, 0
    %v143 = vsel %vm93, %v66, 0
    %v146 = vsel %vm93, %v67, 0
    %v149 = vsel %vm93, %v68, 0
    %v152 = vsel %vm93, %v69, 0
    %v155 = vsel %vm93, %v70, 0
    %v158 = vsel %vm93, %v71, 0
    %v161 = vsel %vm93, %v72, 0
    %v164 = vsel %vm93, %v73, 0
    %v167 = vsel %vm93, %v74, 0
    %v170 = vsel %vm93, %v75, 0
    %v173 = vsel %vm93, %v76, 0
    %v176 = vsel %vm93, %v77, 0
    %v179 = vsel %vm93, %v78, 0
    %v182 = vsel %vm93, %v79, 0
    %v185 = vsel %vm93, %v80, 0
    %v188 = vsel %vm93, %v81, 0
    %190 = vmatprep.subr.mxu0 0.0
    %191 = vmatpush1.msra.mxu0 0.0
    %192 = vmatprep.subr.mxu0 0.0
    %193 = vmatpush1.msra.mxu0 0.0
    %194 = vmatprep.subr.mxu0 0.0
    %195 = vmatpush1.msra.mxu0 0.0
    %196 = vmatprep.subr.mxu0 0.0
    %197 = vmatpush1.msra.mxu0 0.0
    %198 = vmatprep.subr.mxu0 0.0
    %199 = vmatpush1.msra.mxu0 0.0
    %200 = vmatprep.subr.mxu0 0.0
    %201 = vmatpush1.msra.mxu0 0.0
    %202 = vmatprep.subr.mxu0 0.0
    %203 = vmatpush1.msra.mxu0 0.0
    %204 = vmatprep.subr.mxu0 0.0
    %205 = vmatpush1.msra.mxu0 0.0
    %206 = vmatprep.subr.mxu0 0.0
    %207 = vmatpush1.msra.mxu0 0.0
    %208 = vmatprep.subr.mxu0 0.0
    %209 = vmatpush1.msra.mxu0 0.0
    %210 = vmatprep.subr.mxu0 0.0
    %211 = vmatpush1.msra.mxu0 0.0
    %212 = vmatprep.subr.mxu0 0.0
    %213 = vmatpush1.msra.mxu0 0.0
    %214 = vmatprep.subr.mxu0 0.0
    %215 = vmatpush1.msra.mxu0 %v85
    %216 = vmatprep.subr.mxu0 0.0
    %217 = vmatpush1.msra.mxu0 %v84
    %218 = vmatprep.subr.mxu0 0.0
    %219 = vmatpush1.msra.mxu0 %v83
    %220 = vmatprep.subr.mxu0 0.0
    %221 = vmatpush1.msra.mxu0 %v82
    %222 = vmatprep.subr.mxu0 0.0
    %223 = vmatpush2.msra.mxu0 0.0
    %224 = vmatprep.subr.mxu0 0.0
    %225 = vmatpush2.msra.mxu0 0.0
    %226 = vmatprep.subr.mxu0 0.0
    %227 = vmatpush2.msra.mxu0 0.0
    %228 = vmatprep.subr.mxu0 0.0
    %229 = vmatpush2.msra.mxu0 0.0
    %230 = vmatprep.subr.mxu0 0.0
    %231 = vmatpush2.msra.mxu0 0.0
    %232 = vmatprep.subr.mxu0 0.0
    %233 = vmatpush2.msra.mxu0 0.0
    %234 = vmatprep.subr.mxu0 0.0
    %235 = vmatpush2.msra.mxu0 0.0
    %236 = vmatprep.subr.mxu0 0.0
    %237 = vmatpush2.msra.mxu0 0.0
    %238 = vmatprep.subr.mxu0 0.0
    %239 = vmatpush2.msra.mxu0 0.0
    %240 = vmatprep.subr.mxu0 0.0
    %241 = vmatpush2.msra.mxu0 0.0
    %242 = vmatprep.subr.mxu0 0.0
    %243 = vmatpush2.msra.mxu0 0.0
    %244 = vmatprep.subr.mxu0 0.0
    %245 = vmatpush2.msra.mxu0 0.0
    %246 = vmatprep.subr.mxu0 0.0
    %247 = vmatpush2.msra.mxu0 0.0
    %248 = vmatprep.subr.mxu0 0.0
    %249 = vmatpush2.msra.mxu0 0.0
    %250 = vmatprep.subr.mxu0 0.0
    %251 = vmatpush2.msra.mxu0 0.0
    %252 = vmatprep.subr.mxu0 0.0
    %253 = vmatpush2.msra.mxu0 0.0
    %254 = vmatprep.mubr.f32.mxu0 0.0
    %255 = vmatmul.mubr.f32.gmra.mxu0 %v95
    %v256 = vpop.f32.mrf.mxu0
    %v257 = vadd.f32 %v91, %v256
    %v258 = vpop.f32.mrf.mxu0
    %259 = vmatprep.mubr.f32.mxu0 0.0
    %260 = vmatmul.mubr.f32.gmra.mxu0 %v98
    %v261 = vpop.f32.mrf.mxu0
    %v262 = vadd.f32 %v91, %v261
    %v263 = vpop.f32.mrf.mxu0
    %264 = vmatprep.mubr.f32.mxu0 0.0
    %265 = vmatmul.mubr.f32.gmra.mxu0 %v101
    %v266 = vpop.f32.mrf.mxu0
    %v267 = vadd.f32 %v91, %v266
    %v268 = vpop.f32.mrf.mxu0
    %269 = vmatprep.mubr.f32.mxu0 0.0
    %270 = vmatmul.mubr.f32.gmra.mxu0 %v104
    %v271 = vpop.f32.mrf.mxu0
    %v272 = vadd.f32 %v91, %v271
    %v273 = vpop.f32.mrf.mxu0
    %274 = vmatprep.mubr.f32.mxu0 0.0
    %275 = vmatmul.mubr.f32.gmra.mxu0 %v107
    %v276 = vpop.f32.mrf.mxu0
    %v277 = vadd.f32 %v91, %v276
    %v278 = vpop.f32.mrf.mxu0
    %279 = vmatprep.mubr.f32.mxu0 0.0
    %280 = vmatmul.mubr.f32.gmra.mxu0 %v110
    %v281 = vpop.f32.mrf.mxu0
    %v282 = vadd.f32 %v91, %v281
    %v283 = vpop.f32.mrf.mxu0
    %284 = vmatprep.mubr.f32.mxu0 0.0
    %285 = vmatmul.mubr.f32.gmra.mxu0 %v113
    %v286 = vpop.f32.mrf.mxu0
    %v287 = vadd.f32 %v91, %v286
    %v288 = vpop.f32.mrf.mxu0
    %289 = vmatprep.mubr.f32.mxu0 0.0
    %290 = vmatmul.mubr.f32.gmra.mxu0 %v116
    %v291 = vpop.f32.mrf.mxu0
    %v292 = vadd.f32 %v91, %v291
    %v293 = vpop.f32.mrf.mxu0
    %294 = vmatprep.mubr.f32.mxu0 0.0
    %295 = vmatmul.mubr.f32.gmra.mxu0 %v119
    %v296 = vpop.f32.mrf.mxu0
    %v297 = vadd.f32 %v91, %v296
    %v298 = vpop.f32.mrf.mxu0
    %299 = vmatprep.mubr.f32.mxu0 0.0
    %300 = vmatmul.mubr.f32.gmra.mxu0 %v122
    %v301 = vpop.f32.mrf.mxu0
    %v302 = vadd.f32 %v91, %v301
    %v303 = vpop.f32.mrf.mxu0
    %304 = vmatprep.mubr.f32.mxu0 0.0
    %305 = vmatmul.mubr.f32.gmra.mxu0 %v125
    %v306 = vpop.f32.mrf.mxu0
    %v307 = vadd.f32 %v91, %v306
    %v308 = vpop.f32.mrf.mxu0
    %309 = vmatprep.mubr.f32.mxu0 0.0
    %310 = vmatmul.mubr.f32.gmra.mxu0 %v128
    %v311 = vpop.f32.mrf.mxu0
    %v312 = vadd.f32 %v91, %v311
    %v313 = vpop.f32.mrf.mxu0
    %314 = vmatprep.mubr.f32.mxu0 0.0
    %315 = vmatmul.mubr.f32.gmra.mxu0 %v131
    %v316 = vpop.f32.mrf.mxu0
    %v317 = vadd.f32 %v91, %v316
    %v318 = vpop.f32.mrf.mxu0
    %319 = vmatprep.mubr.f32.mxu0 0.0
    %320 = vmatmul.mubr.f32.gmra.mxu0 %v134
    %v321 = vpop.f32.mrf.mxu0
    %v322 = vadd.f32 %v91, %v321
    %v323 = vpop.f32.mrf.mxu0
    %324 = vmatprep.mubr.f32.mxu0 0.0
    %325 = vmatmul.mubr.f32.gmra.mxu0 %v137
    %v326 = vpop.f32.mrf.mxu0
    %v327 = vadd.f32 %v91, %v326
    %v328 = vpop.f32.mrf.mxu0
    %329 = vmatprep.mubr.f32.mxu0 0.0
    %330 = vmatmul.mubr.f32.gmra.mxu0 %v140
    %v331 = vpop.f32.mrf.mxu0
    %v332 = vadd.f32 %v91, %v331
    %v333 = vpop.f32.mrf.mxu0
    %334 = vmatprep.mubr.f32.mxu0 0.0
    %335 = vmatmul.mubr.f32.gmra.mxu0 %v143
    %v336 = vpop.f32.mrf.mxu0
    %v337 = vadd.f32 %v91, %v336
    %v338 = vpop.f32.mrf.mxu0
    %339 = vmatprep.mubr.f32.mxu0 0.0
    %340 = vmatmul.mubr.f32.gmra.mxu0 %v146
    %v341 = vpop.f32.mrf.mxu0
    %v342 = vadd.f32 %v91, %v341
    %v343 = vpop.f32.mrf.mxu0
    %344 = vmatprep.mubr.f32.mxu0 0.0
    %345 = vmatmul.mubr.f32.gmra.mxu0 %v149
    %v346 = vpop.f32.mrf.mxu0
    %v347 = vadd.f32 %v91, %v346
    %v348 = vpop.f32.mrf.mxu0
    %349 = vmatprep.mubr.f32.mxu0 0.0
    %350 = vmatmul.mubr.f32.gmra.mxu0 %v152
    %v351 = vpop.f32.mrf.mxu0
    %v352 = vadd.f32 %v91, %v351
    %v353 = vpop.f32.mrf.mxu0
    %354 = vmatprep.mubr.f32.mxu0 0.0
    %355 = vmatmul.mubr.f32.gmra.mxu0 %v155
    %v356 = vpop.f32.mrf.mxu0
    %v357 = vadd.f32 %v91, %v356
    %v358 = vpop.f32.mrf.mxu0
    %359 = vmatprep.mubr.f32.mxu0 0.0
    %360 = vmatmul.mubr.f32.gmra.mxu0 %v158
    %v361 = vpop.f32.mrf.mxu0
    %v362 = vadd.f32 %v91, %v361
    %v363 = vpop.f32.mrf.mxu0
    %364 = vmatprep.mubr.f32.mxu0 0.0
    %365 = vmatmul.mubr.f32.gmra.mxu0 %v161
    %v366 = vpop.f32.mrf.mxu0
    %v367 = vadd.f32 %v91, %v366
    %v368 = vpop.f32.mrf.mxu0
    %369 = vmatprep.mubr.f32.mxu0 0.0
    %370 = vmatmul.mubr.f32.gmra.mxu0 %v164
    %v371 = vpop.f32.mrf.mxu0
    %v372 = vadd.f32 %v91, %v371
    %v373 = vpop.f32.mrf.mxu0
    %374 = vmatprep.mubr.f32.mxu0 0.0
    %375 = vmatmul.mubr.f32.gmra.mxu0 %v167
    %v376 = vpop.f32.mrf.mxu0
    %v377 = vadd.f32 %v91, %v376
    %v378 = vpop.f32.mrf.mxu0
    %379 = vmatprep.mubr.f32.mxu0 0.0
    %380 = vmatmul.mubr.f32.gmra.mxu0 %v170
    %v381 = vpop.f32.mrf.mxu0
    %v382 = vadd.f32 %v91, %v381
    %v383 = vpop.f32.mrf.mxu0
    %384 = vmatprep.mubr.f32.mxu0 0.0
    %385 = vmatmul.mubr.f32.gmra.mxu0 %v173
    %v386 = vpop.f32.mrf.mxu0
    %v387 = vadd.f32 %v91, %v386
    %v388 = vpop.f32.mrf.mxu0
    %389 = vmatprep.mubr.f32.mxu0 0.0
    %390 = vmatmul.mubr.f32.gmra.mxu0 %v176
    %v391 = vpop.f32.mrf.mxu0
    %v392 = vadd.f32 %v91, %v391
    %v393 = vpop.f32.mrf.mxu0
    %394 = vmatprep.mubr.f32.mxu0 0.0
    %395 = vmatmul.mubr.f32.gmra.mxu0 %v179
    %v396 = vpop.f32.mrf.mxu0
    %v397 = vadd.f32 %v91, %v396
    %v398 = vpop.f32.mrf.mxu0
    %399 = vmatprep.mubr.f32.mxu0 0.0
    %400 = vmatmul.mubr.f32.gmra.mxu0 %v182
    %v401 = vpop.f32.mrf.mxu0
    %v402 = vadd.f32 %v91, %v401
    %v403 = vpop.f32.mrf.mxu0
    %404 = vmatprep.mubr.f32.mxu0 0.0
    %405 = vmatmul.mubr.f32.gmra.mxu0 %v185
    %v406 = vpop.f32.mrf.mxu0
    %v407 = vadd.f32 %v91, %v406
    %v408 = vpop.f32.mrf.mxu0
    %409 = vmatprep.mubr.f32.mxu0 0.0
    %410 = vmatmul.mubr.f32.gmra.mxu0 %v188
    %v411 = vpop.f32.mrf.mxu0
    %v412 = vadd.f32 %v91, %v411
    %v413 = vpop.f32.mrf.mxu0
    %414 = vdwg.mxu0
    %v415 = vmax.f32 %v257, 0.0
    %v416 = vmax.f32 %v262, 0.0
    %v417 = vmax.f32 %v267, 0.0
    %v418 = vmax.f32 %v272, 0.0
    %v419 = vmax.f32 %v277, 0.0
    %v420 = vmax.f32 %v282, 0.0
    %v421 = vmax.f32 %v287, 0.0
    %v422 = vmax.f32 %v292, 0.0
    %v423 = vmax.f32 %v297, 0.0
    %v424 = vmax.f32 %v302, 0.0
    %v425 = vmax.f32 %v307, 0.0
    %v426 = vmax.f32 %v312, 0.0
    %v427 = vmax.f32 %v317, 0.0
    %v428 = vmax.f32 %v322, 0.0
    %v429 = vmax.f32 %v327, 0.0
    %v430 = vmax.f32 %v332, 0.0
    %v431 = vmax.f32 %v337, 0.0
    %v432 = vmax.f32 %v342, 0.0
    %v433 = vmax.f32 %v347, 0.0
    %v434 = vmax.f32 %v352, 0.0
    %v435 = vmax.f32 %v357, 0.0
    %v436 = vmax.f32 %v362, 0.0
    %v437 = vmax.f32 %v367, 0.0
    %v438 = vmax.f32 %v372, 0.0
    %v439 = vmax.f32 %v377, 0.0
    %v440 = vmax.f32 %v382, 0.0
    %v441 = vmax.f32 %v387, 0.0
    %v442 = vmax.f32 %v392, 0.0
    %v443 = vmax.f32 %v397, 0.0
    %v444 = vmax.f32 %v402, 0.0
    %v445 = vmax.f32 %v407, 0.0
    %v446 = vmax.f32 %v412, 0.0
    %v447 = vld [vmem:[%s3] sm:$0xff]
    %v448 = vld [vmem:[%s3 + $0x8] sm:$0xff]
    %v449 = vld [vmem:[%s3 + $0x10] sm:$0xff]
    %v450 = vld [vmem:[%s3 + $0x18] sm:$0xff]
    %v451 = vld [vmem:[%s3 + $0x20] sm:$0xff]
    %v452 = vld [vmem:[%s3 + $0x28] sm:$0xff]
    %v453 = vld [vmem:[%s3 + $0x30] sm:$0xff]
    %v454 = vld [vmem:[%s3 + $0x38] sm:$0xff]
    %v455 = vld [vmem:[%s3 + $0x40] sm:$0xff]
    %v456 = vld [vmem:[%s3 + $0x48] sm:$0xff]
    %v457 = vld [vmem:[%s3 + $0x50] sm:$0xff]
    %v458 = vld [vmem:[%s3 + $0x58] sm:$0xff]
    %v459 = vld [vmem:[%s3 + $0x60] sm:$0xff]
    %v460 = vld [vmem:[%s3 + $0x68] sm:$0xff]
    %v461 = vld [vmem:[%s3 + $0x70] sm:$0xff]
    %v462 = vld [vmem:[%s3 + $0x78] sm:$0xff]
    %v463 = vld [vmem:[%s4] sm:$0x1]
    %v465 = vlaneseq
    %v466 = vshrl.u32 %v465, 7
    %v467 = vsub.s32 0, %v466
    %v468 = vrot.slane %v463, %v467
    %470 = vmatprep.subr.mxu0 0.0
    %471 = vmatpush1.msra.mxu0 %v462
    %472 = vmatprep.subr.mxu0 0.0
    %473 = vmatpush1.msra.mxu0 %v461
    %474 = vmatprep.subr.mxu0 0.0
    %475 = vmatpush1.msra.mxu0 %v460
    %476 = vmatprep.subr.mxu0 0.0
    %477 = vmatpush1.msra.mxu0 %v459
    %478 = vmatprep.subr.mxu0 0.0
    %479 = vmatpush1.msra.mxu0 %v458
    %480 = vmatprep.subr.mxu0 0.0
    %481 = vmatpush1.msra.mxu0 %v457
    %482 = vmatprep.subr.mxu0 0.0
    %483 = vmatpush1.msra.mxu0 %v456
    %484 = vmatprep.subr.mxu0 0.0
    %485 = vmatpush1.msra.mxu0 %v455
    %486 = vmatprep.subr.mxu0 0.0
    %487 = vmatpush1.msra.mxu0 %v454
    %488 = vmatprep.subr.mxu0 0.0
    %489 = vmatpush1.msra.mxu0 %v453
    %490 = vmatprep.subr.mxu0 0.0
    %491 = vmatpush1.msra.mxu0 %v452
    %492 = vmatprep.subr.mxu0 0.0
    %493 = vmatpush1.msra.mxu0 %v451
    %494 = vmatprep.subr.mxu0 0.0
    %495 = vmatpush1.msra.mxu0 %v450
    %496 = vmatprep.subr.mxu0 0.0
    %497 = vmatpush1.msra.mxu0 %v449
    %498 = vmatprep.subr.mxu0 0.0
    %499 = vmatpush1.msra.mxu0 %v448
    %500 = vmatprep.subr.mxu0 0.0
    %501 = vmatpush1.msra.mxu0 %v447
    %502 = vmatprep.subr.mxu0 0.0
    %503 = vmatpush2.msra.mxu0 0.0
    %504 = vmatprep.subr.mxu0 0.0
    %505 = vmatpush2.msra.mxu0 0.0
    %506 = vmatprep.subr.mxu0 0.0
    %507 = vmatpush2.msra.mxu0 0.0
    %508 = vmatprep.subr.mxu0 0.0
    %509 = vmatpush2.msra.mxu0 0.0
    %510 = vmatprep.subr.mxu0 0.0
    %511 = vmatpush2.msra.mxu0 0.0
    %512 = vmatprep.subr.mxu0 0.0
    %513 = vmatpush2.msra.mxu0 0.0
    %514 = vmatprep.subr.mxu0 0.0
    %515 = vmatpush2.msra.mxu0 0.0
    %516 = vmatprep.subr.mxu0 0.0
    %517 = vmatpush2.msra.mxu0 0.0
    %518 = vmatprep.subr.mxu0 0.0
    %519 = vmatpush2.msra.mxu0 0.0
    %520 = vmatprep.subr.mxu0 0.0
    %521 = vmatpush2.msra.mxu0 0.0
    %522 = vmatprep.subr.mxu0 0.0
    %523 = vmatpush2.msra.mxu0 0.0
    %524 = vmatprep.subr.mxu0 0.0
    %525 = vmatpush2.msra.mxu0 0.0
    %526 = vmatprep.subr.mxu0 0.0
    %527 = vmatpush2.msra.mxu0 0.0
    %528 = vmatprep.subr.mxu0 0.0
    %529 = vmatpush2.msra.mxu0 0.0
    %530 = vmatprep.subr.mxu0 0.0
    %531 = vmatpush2.msra.mxu0 0.0
    %532 = vmatprep.subr.mxu0 0.0
    %533 = vmatpush2.msra.mxu0 0.0
    %534 = vmatprep.mubr.f32.mxu0 0.0
    %535 = vmatmul.mubr.f32.gmra.mxu0 %v415
    %v536 = vpop.f32.mrf.mxu0
    %v537 = vadd.f32 %v468, %v536
    %v538 = vpop.f32.mrf.mxu0
    %539 = vmatprep.mubr.f32.mxu0 0.0
    %540 = vmatmul.mubr.f32.gmra.mxu0 %v416
    %v541 = vpop.f32.mrf.mxu0
    %v542 = vadd.f32 %v468, %v541
    %v543 = vpop.f32.mrf.mxu0
    %544 = vmatprep.mubr.f32.mxu0 0.0
    %545 = vmatmul.mubr.f32.gmra.mxu0 %v417
    %v546 = vpop.f32.mrf.mxu0
    %v547 = vadd.f32 %v468, %v546
    %v548 = vpop.f32.mrf.mxu0
    %549 = vmatprep.mubr.f32.mxu0 0.0
    %550 = vmatmul.mubr.f32.gmra.mxu0 %v418
    %v551 = vpop.f32.mrf.mxu0
    %v552 = vadd.f32 %v468, %v551
    %v553 = vpop.f32.mrf.mxu0
    %554 = vmatprep.mubr.f32.mxu0 0.0
    %555 = vmatmul.mubr.f32.gmra.mxu0 %v419
    %v556 = vpop.f32.mrf.mxu0
    %v557 = vadd.f32 %v468, %v556
    %v558 = vpop.f32.mrf.mxu0
    %559 = vmatprep.mubr.f32.mxu0 0.0
    %560 = vmatmul.mubr.f32.gmra.mxu0 %v420
    %v561 = vpop.f32.mrf.mxu0
    %v562 = vadd.f32 %v468, %v561
    %v563 = vpop.f32.mrf.mxu0
    %564 = vmatprep.mubr.f32.mxu0 0.0
    %565 = vmatmul.mubr.f32.gmra.mxu0 %v421
    %v566 = vpop.f32.mrf.mxu0
    %v567 = vadd.f32 %v468, %v566
    %v568 = vpop.f32.mrf.mxu0
    %569 = vmatprep.mubr.f32.mxu0 0.0
    %570 = vmatmul.mubr.f32.gmra.mxu0 %v422
    %v571 = vpop.f32.mrf.mxu0
    %v572 = vadd.f32 %v468, %v571
    %v573 = vpop.f32.mrf.mxu0
    %574 = vmatprep.mubr.f32.mxu0 0.0
    %575 = vmatmul.mubr.f32.gmra.mxu0 %v423
    %v576 = vpop.f32.mrf.mxu0
    %v577 = vadd.f32 %v468, %v576
    %v578 = vpop.f32.mrf.mxu0
    %579 = vmatprep.mubr.f32.mxu0 0.0
    %580 = vmatmul.mubr.f32.gmra.mxu0 %v424
    %v581 = vpop.f32.mrf.mxu0
    %v582 = vadd.f32 %v468, %v581
    %v583 = vpop.f32.mrf.mxu0
    %584 = vmatprep.mubr.f32.mxu0 0.0
    %585 = vmatmul.mubr.f32.gmra.mxu0 %v425
    %v586 = vpop.f32.mrf.mxu0
    %v587 = vadd.f32 %v468, %v586
    %v588 = vpop.f32.mrf.mxu0
    %589 = vmatprep.mubr.f32.mxu0 0.0
    %590 = vmatmul.mubr.f32.gmra.mxu0 %v426
    %v591 = vpop.f32.mrf.mxu0
    %v592 = vadd.f32 %v468, %v591
    %v593 = vpop.f32.mrf.mxu0
    %594 = vmatprep.mubr.f32.mxu0 0.0
    %595 = vmatmul.mubr.f32.gmra.mxu0 %v427
    %v596 = vpop.f32.mrf.mxu0
    %v597 = vadd.f32 %v468, %v596
    %v598 = vpop.f32.mrf.mxu0
    %599 = vmatprep.mubr.f32.mxu0 0.0
    %600 = vmatmul.mubr.f32.gmra.mxu0 %v428
    %v601 = vpop.f32.mrf.mxu0
    %v602 = vadd.f32 %v468, %v601
    %v603 = vpop.f32.mrf.mxu0
    %604 = vmatprep.mubr.f32.mxu0 0.0
    %605 = vmatmul.mubr.f32.gmra.mxu0 %v429
    %v606 = vpop.f32.mrf.mxu0
    %v607 = vadd.f32 %v468, %v606
    %v608 = vpop.f32.mrf.mxu0
    %609 = vmatprep.mubr.f32.mxu0 0.0
    %610 = vmatmul.mubr.f32.gmra.mxu0 %v430
    %v611 = vpop.f32.mrf.mxu0
    %v612 = vadd.f32 %v468, %v611
    %v613 = vpop.f32.mrf.mxu0
    %614 = vmatprep.mubr.f32.mxu0 0.0
    %615 = vmatmul.mubr.f32.gmra.mxu0 %v431
    %v616 = vpop.f32.mrf.mxu0
    %v617 = vadd.f32 %v468, %v616
    %v618 = vpop.f32.mrf.mxu0
    %619 = vmatprep.mubr.f32.mxu0 0.0
    %620 = vmatmul.mubr.f32.gmra.mxu0 %v432
    %v621 = vpop.f32.mrf.mxu0
    %v622 = vadd.f32 %v468, %v621
    %v623 = vpop.f32.mrf.mxu0
    %624 = vmatprep.mubr.f32.mxu0 0.0
    %625 = vmatmul.mubr.f32.gmra.mxu0 %v433
    %v626 = vpop.f32.mrf.mxu0
    %v627 = vadd.f32 %v468, %v626
    %v628 = vpop.f32.mrf.mxu0
    %629 = vmatprep.mubr.f32.mxu0 0.0
    %630 = vmatmul.mubr.f32.gmra.mxu0 %v434
    %v631 = vpop.f32.mrf.mxu0
    %v632 = vadd.f32 %v468, %v631
    %v633 = vpop.f32.mrf.mxu0
    %634 = vmatprep.mubr.f32.mxu0 0.0
    %635 = vmatmul.mubr.f32.gmra.mxu0 %v435
    %v636 = vpop.f32.mrf.mxu0
    %v637 = vadd.f32 %v468, %v636
    %v638 = vpop.f32.mrf.mxu0
    %639 = vmatprep.mubr.f32.mxu0 0.0
    %640 = vmatmul.mubr.f32.gmra.mxu0 %v436
    %v641 = vpop.f32.mrf.mxu0
    %v642 = vadd.f32 %v468, %v641
    %v643 = vpop.f32.mrf.mxu0
    %644 = vmatprep.mubr.f32.mxu0 0.0
    %645 = vmatmul.mubr.f32.gmra.mxu0 %v437
    %v646 = vpop.f32.mrf.mxu0
    %v647 = vadd.f32 %v468, %v646
    %v648 = vpop.f32.mrf.mxu0
    %649 = vmatprep.mubr.f32.mxu0 0.0
    %650 = vmatmul.mubr.f32.gmra.mxu0 %v438
    %v651 = vpop.f32.mrf.mxu0
    %v652 = vadd.f32 %v468, %v651
    %v653 = vpop.f32.mrf.mxu0
    %654 = vmatprep.mubr.f32.mxu0 0.0
    %655 = vmatmul.mubr.f32.gmra.mxu0 %v439
    %v656 = vpop.f32.mrf.mxu0
    %v657 = vadd.f32 %v468, %v656
    %v658 = vpop.f32.mrf.mxu0
    %659 = vmatprep.mubr.f32.mxu0 0.0
    %660 = vmatmul.mubr.f32.gmra.mxu0 %v440
    %v661 = vpop.f32.mrf.mxu0
    %v662 = vadd.f32 %v468, %v661
    %v663 = vpop.f32.mrf.mxu0
    %664 = vmatprep.mubr.f32.mxu0 0.0
    %665 = vmatmul.mubr.f32.gmra.mxu0 %v441
    %v666 = vpop.f32.mrf.mxu0
    %v667 = vadd.f32 %v468, %v666
    %v668 = vpop.f32.mrf.mxu0
    %669 = vmatprep.mubr.f32.mxu0 0.0
    %670 = vmatmul.mubr.f32.gmra.mxu0 %v442
    %v671 = vpop.f32.mrf.mxu0
    %v672 = vadd.f32 %v468, %v671
    %v673 = vpop.f32.mrf.mxu0
    %674 = vmatprep.mubr.f32.mxu0 0.0
    %675 = vmatmul.mubr.f32.gmra.mxu0 %v443
    %v676 = vpop.f32.mrf.mxu0
    %v677 = vadd.f32 %v468, %v676
    %v678 = vpop.f32.mrf.mxu0
    %679 = vmatprep.mubr.f32.mxu0 0.0
    %680 = vmatmul.mubr.f32.gmra.mxu0 %v444
    %v681 = vpop.f32.mrf.mxu0
    %v682 = vadd.f32 %v468, %v681
    %v683 = vpop.f32.mrf.mxu0
    %684 = vmatprep.mubr.f32.mxu0 0.0
    %685 = vmatmul.mubr.f32.gmra.mxu0 %v445
    %v686 = vpop.f32.mrf.mxu0
    %v687 = vadd.f32 %v468, %v686
    %v688 = vpop.f32.mrf.mxu0
    %689 = vmatprep.mubr.f32.mxu0 0.0
    %690 = vmatmul.mubr.f32.gmra.mxu0 %v446
    %v691 = vpop.f32.mrf.mxu0
    %v692 = vadd.f32 %v468, %v691
    %v693 = vpop.f32.mrf.mxu0
    %694 = vdwg.mxu0
    %v695 = vmax.f32 %v537, 0.0
    %v696 = vmax.f32 %v542, 0.0
    %v697 = vmax.f32 %v547, 0.0
    %v698 = vmax.f32 %v552, 0.0
    %v699 = vmax.f32 %v557, 0.0
    %v700 = vmax.f32 %v562, 0.0
    %v701 = vmax.f32 %v567, 0.0
    %v702 = vmax.f32 %v572, 0.0
    %v703 = vmax.f32 %v577, 0.0
    %v704 = vmax.f32 %v582, 0.0
    %v705 = vmax.f32 %v587, 0.0
    %v706 = vmax.f32 %v592, 0.0
    %v707 = vmax.f32 %v597, 0.0
    %v708 = vmax.f32 %v602, 0.0
    %v709 = vmax.f32 %v607, 0.0
    %v710 = vmax.f32 %v612, 0.0
    %v711 = vmax.f32 %v617, 0.0
    %v712 = vmax.f32 %v622, 0.0
    %v713 = vmax.f32 %v627, 0.0
    %v714 = vmax.f32 %v632, 0.0
    %v715 = vmax.f32 %v637, 0.0
    %v716 = vmax.f32 %v642, 0.0
    %v717 = vmax.f32 %v647, 0.0
    %v718 = vmax.f32 %v652, 0.0
    %v719 = vmax.f32 %v657, 0.0
    %v720 = vmax.f32 %v662, 0.0
    %v721 = vmax.f32 %v667, 0.0
    %v722 = vmax.f32 %v672, 0.0
    %v723 = vmax.f32 %v677, 0.0
    %v724 = vmax.f32 %v682, 0.0
    %v725 = vmax.f32 %v687, 0.0
    %v726 = vmax.f32 %v692, 0.0
    %v727 = vld [vmem:[%s5] sm:$0xff]
    %v728 = vld [vmem:[%s5 + $0x8] sm:$0xff]
    %v729 = vld [vmem:[%s5 + $0x10] sm:$0xff]
    %v730 = vld [vmem:[%s5 + $0x18] sm:$0xff]
    %v731 = vld [vmem:[%s5 + $0x20] sm:$0xff]
    %v732 = vld [vmem:[%s5 + $0x28] sm:$0xff]
    %v733 = vld [vmem:[%s5 + $0x30] sm:$0xff]
    %v734 = vld [vmem:[%s5 + $0x38] sm:$0xff]
    %v735 = vld [vmem:[%s5 + $0x40] sm:$0xff]
    %v736 = vld [vmem:[%s5 + $0x48] sm:$0xff]
    %v737 = vld [vmem:[%s5 + $0x50] sm:$0xff]
    %v738 = vld [vmem:[%s5 + $0x58] sm:$0xff]
    %v739 = vld [vmem:[%s5 + $0x60] sm:$0xff]
    %v740 = vld [vmem:[%s5 + $0x68] sm:$0xff]
    %v741 = vld [vmem:[%s5 + $0x70] sm:$0xff]
    %v742 = vld [vmem:[%s5 + $0x78] sm:$0xff]
    %v743 = vld [vmem:[%s6] sm:$0x1]
    %v745 = vlaneseq
    %v746 = vshrl.u32 %v745, 7
    %v747 = vsub.s32 0, %v746
    %v748 = vrot.slane %v743, %v747
    %750 = vmatprep.subr.mxu0 0.0
    %751 = vmatpush1.msra.mxu0 %v742
    %752 = vmatprep.subr.mxu0 0.0
    %753 = vmatpush1.msra.mxu0 %v741
    %754 = vmatprep.subr.mxu0 0.0
    %755 = vmatpush1.msra.mxu0 %v740
    %756 = vmatprep.subr.mxu0 0.0
    %757 = vmatpush1.msra.mxu0 %v739
    %758 = vmatprep.subr.mxu0 0.0
    %759 = vmatpush1.msra.mxu0 %v738
    %760 = vmatprep.subr.mxu0 0.0
    %761 = vmatpush1.msra.mxu0 %v737
    %762 = vmatprep.subr.mxu0 0.0
    %763 = vmatpush1.msra.mxu0 %v736
    %764 = vmatprep.subr.mxu0 0.0
    %765 = vmatpush1.msra.mxu0 %v735
    %766 = vmatprep.subr.mxu0 0.0
    %767 = vmatpush1.msra.mxu0 %v734
    %768 = vmatprep.subr.mxu0 0.0
    %769 = vmatpush1.msra.mxu0 %v733
    %770 = vmatprep.subr.mxu0 0.0
    %771 = vmatpush1.msra.mxu0 %v732
    %772 = vmatprep.subr.mxu0 0.0
    %773 = vmatpush1.msra.mxu0 %v731
    %774 = vmatprep.subr.mxu0 0.0
    %775 = vmatpush1.msra.mxu0 %v730
    %776 = vmatprep.subr.mxu0 0.0
    %777 = vmatpush1.msra.mxu0 %v729
    %778 = vmatprep.subr.mxu0 0.0
    %779 = vmatpush1.msra.mxu0 %v728
    %780 = vmatprep.subr.mxu0 0.0
    %781 = vmatpush1.msra.mxu0 %v727
    %782 = vmatprep.subr.mxu0 0.0
    %783 = vmatpush2.msra.mxu0 0.0
    %784 = vmatprep.subr.mxu0 0.0
    %785 = vmatpush2.msra.mxu0 0.0
    %786 = vmatprep.subr.mxu0 0.0
    %787 = vmatpush2.msra.mxu0 0.0
    %788 = vmatprep.subr.mxu0 0.0
    %789 = vmatpush2.msra.mxu0 0.0
    %790 = vmatprep.subr.mxu0 0.0
    %791 = vmatpush2.msra.mxu0 0.0
    %792 = vmatprep.subr.mxu0 0.0
    %793 = vmatpush2.msra.mxu0 0.0
    %794 = vmatprep.subr.mxu0 0.0
    %795 = vmatpush2.msra.mxu0 0.0
    %796 = vmatprep.subr.mxu0 0.0
    %797 = vmatpush2.msra.mxu0 0.0
    %798 = vmatprep.subr.mxu0 0.0
    %799 = vmatpush2.msra.mxu0 0.0
    %800 = vmatprep.subr.mxu0 0.0
    %801 = vmatpush2.msra.mxu0 0.0
    %802 = vmatprep.subr.mxu0 0.0
    %803 = vmatpush2.msra.mxu0 0.0
    %804 = vmatprep.subr.mxu0 0.0
    %805 = vmatpush2.msra.mxu0 0.0
    %806 = vmatprep.subr.mxu0 0.0
    %807 = vmatpush2.msra.mxu0 0.0
    %808 = vmatprep.subr.mxu0 0.0
    %809 = vmatpush2.msra.mxu0 0.0
    %810 = vmatprep.subr.mxu0 0.0
    %811 = vmatpush2.msra.mxu0 0.0
    %812 = vmatprep.subr.mxu0 0.0
    %813 = vmatpush2.msra.mxu0 0.0
    %814 = vmatprep.mubr.f32.mxu0 0.0
    %815 = vmatmul.mubr.f32.gmra.mxu0 %v695
    %v816 = vpop.f32.mrf.mxu0
    %v817 = vadd.f32 %v748, %v816
    %v818 = vpop.f32.mrf.mxu0
    %819 = vmatprep.mubr.f32.mxu0 0.0
    %820 = vmatmul.mubr.f32.gmra.mxu0 %v696
    %v821 = vpop.f32.mrf.mxu0
    %v822 = vadd.f32 %v748, %v821
    %v823 = vpop.f32.mrf.mxu0
    %824 = vmatprep.mubr.f32.mxu0 0.0
    %825 = vmatmul.mubr.f32.gmra.mxu0 %v697
    %v826 = vpop.f32.mrf.mxu0
    %v827 = vadd.f32 %v748, %v826
    %v828 = vpop.f32.mrf.mxu0
    %829 = vmatprep.mubr.f32.mxu0 0.0
    %830 = vmatmul.mubr.f32.gmra.mxu0 %v698
    %v831 = vpop.f32.mrf.mxu0
    %v832 = vadd.f32 %v748, %v831
    %v833 = vpop.f32.mrf.mxu0
    %834 = vmatprep.mubr.f32.mxu0 0.0
    %835 = vmatmul.mubr.f32.gmra.mxu0 %v699
    %v836 = vpop.f32.mrf.mxu0
    %v837 = vadd.f32 %v748, %v836
    %v838 = vpop.f32.mrf.mxu0
    %839 = vmatprep.mubr.f32.mxu0 0.0
    %840 = vmatmul.mubr.f32.gmra.mxu0 %v700
    %v841 = vpop.f32.mrf.mxu0
    %v842 = vadd.f32 %v748, %v841
    %v843 = vpop.f32.mrf.mxu0
    %844 = vmatprep.mubr.f32.mxu0 0.0
    %845 = vmatmul.mubr.f32.gmra.mxu0 %v701
    %v846 = vpop.f32.mrf.mxu0
    %v847 = vadd.f32 %v748, %v846
    %v848 = vpop.f32.mrf.mxu0
    %849 = vmatprep.mubr.f32.mxu0 0.0
    %850 = vmatmul.mubr.f32.gmra.mxu0 %v702
    %v851 = vpop.f32.mrf.mxu0
    %v852 = vadd.f32 %v748, %v851
    %v853 = vpop.f32.mrf.mxu0
    %854 = vmatprep.mubr.f32.mxu0 0.0
    %855 = vmatmul.mubr.f32.gmra.mxu0 %v703
    %v856 = vpop.f32.mrf.mxu0
    %v857 = vadd.f32 %v748, %v856
    %v858 = vpop.f32.mrf.mxu0
    %859 = vmatprep.mubr.f32.mxu0 0.0
    %860 = vmatmul.mubr.f32.gmra.mxu0 %v704
    %v861 = vpop.f32.mrf.mxu0
    %v862 = vadd.f32 %v748, %v861
    %v863 = vpop.f32.mrf.mxu0
    %864 = vmatprep.mubr.f32.mxu0 0.0
    %865 = vmatmul.mubr.f32.gmra.mxu0 %v705
    %v866 = vpop.f32.mrf.mxu0
    %v867 = vadd.f32 %v748, %v866
    %v868 = vpop.f32.mrf.mxu0
    %869 = vmatprep.mubr.f32.mxu0 0.0
    %870 = vmatmul.mubr.f32.gmra.mxu0 %v706
    %v871 = vpop.f32.mrf.mxu0
    %v872 = vadd.f32 %v748, %v871
    %v873 = vpop.f32.mrf.mxu0
    %874 = vmatprep.mubr.f32.mxu0 0.0
    %875 = vmatmul.mubr.f32.gmra.mxu0 %v707
    %v876 = vpop.f32.mrf.mxu0
    %v877 = vadd.f32 %v748, %v876
    %v878 = vpop.f32.mrf.mxu0
    %879 = vmatprep.mubr.f32.mxu0 0.0
    %880 = vmatmul.mubr.f32.gmra.mxu0 %v708
    %v881 = vpop.f32.mrf.mxu0
    %v882 = vadd.f32 %v748, %v881
    %v883 = vpop.f32.mrf.mxu0
    %884 = vmatprep.mubr.f32.mxu0 0.0
    %885 = vmatmul.mubr.f32.gmra.mxu0 %v709
    %v886 = vpop.f32.mrf.mxu0
    %v887 = vadd.f32 %v748, %v886
    %v888 = vpop.f32.mrf.mxu0
    %889 = vmatprep.mubr.f32.mxu0 0.0
    %890 = vmatmul.mubr.f32.gmra.mxu0 %v710
    %v891 = vpop.f32.mrf.mxu0
    %v892 = vadd.f32 %v748, %v891
    %v893 = vpop.f32.mrf.mxu0
    %894 = vmatprep.mubr.f32.mxu0 0.0
    %895 = vmatmul.mubr.f32.gmra.mxu0 %v711
    %v896 = vpop.f32.mrf.mxu0
    %v897 = vadd.f32 %v748, %v896
    %v898 = vpop.f32.mrf.mxu0
    %899 = vmatprep.mubr.f32.mxu0 0.0
    %900 = vmatmul.mubr.f32.gmra.mxu0 %v712
    %v901 = vpop.f32.mrf.mxu0
    %v902 = vadd.f32 %v748, %v901
    %v903 = vpop.f32.mrf.mxu0
    %904 = vmatprep.mubr.f32.mxu0 0.0
    %905 = vmatmul.mubr.f32.gmra.mxu0 %v713
    %v906 = vpop.f32.mrf.mxu0
    %v907 = vadd.f32 %v748, %v906
    %v908 = vpop.f32.mrf.mxu0
    %909 = vmatprep.mubr.f32.mxu0 0.0
    %910 = vmatmul.mubr.f32.gmra.mxu0 %v714
    %v911 = vpop.f32.mrf.mxu0
    %v912 = vadd.f32 %v748, %v911
    %v913 = vpop.f32.mrf.mxu0
    %914 = vmatprep.mubr.f32.mxu0 0.0
    %915 = vmatmul.mubr.f32.gmra.mxu0 %v715
    %v916 = vpop.f32.mrf.mxu0
    %v917 = vadd.f32 %v748, %v916
    %v918 = vpop.f32.mrf.mxu0
    %919 = vmatprep.mubr.f32.mxu0 0.0
    %920 = vmatmul.mubr.f32.gmra.mxu0 %v716
    %v921 = vpop.f32.mrf.mxu0
    %v922 = vadd.f32 %v748, %v921
    %v923 = vpop.f32.mrf.mxu0
    %924 = vmatprep.mubr.f32.mxu0 0.0
    %925 = vmatmul.mubr.f32.gmra.mxu0 %v717
    %v926 = vpop.f32.mrf.mxu0
    %v927 = vadd.f32 %v748, %v926
    %v928 = vpop.f32.mrf.mxu0
    %929 = vmatprep.mubr.f32.mxu0 0.0
    %930 = vmatmul.mubr.f32.gmra.mxu0 %v718
    %v931 = vpop.f32.mrf.mxu0
    %v932 = vadd.f32 %v748, %v931
    %v933 = vpop.f32.mrf.mxu0
    %934 = vmatprep.mubr.f32.mxu0 0.0
    %935 = vmatmul.mubr.f32.gmra.mxu0 %v719
    %v936 = vpop.f32.mrf.mxu0
    %v937 = vadd.f32 %v748, %v936
    %v938 = vpop.f32.mrf.mxu0
    %939 = vmatprep.mubr.f32.mxu0 0.0
    %940 = vmatmul.mubr.f32.gmra.mxu0 %v720
    %v941 = vpop.f32.mrf.mxu0
    %v942 = vadd.f32 %v748, %v941
    %v943 = vpop.f32.mrf.mxu0
    %944 = vmatprep.mubr.f32.mxu0 0.0
    %945 = vmatmul.mubr.f32.gmra.mxu0 %v721
    %v946 = vpop.f32.mrf.mxu0
    %v947 = vadd.f32 %v748, %v946
    %v948 = vpop.f32.mrf.mxu0
    %949 = vmatprep.mubr.f32.mxu0 0.0
    %950 = vmatmul.mubr.f32.gmra.mxu0 %v722
    %v951 = vpop.f32.mrf.mxu0
    %v952 = vadd.f32 %v748, %v951
    %v953 = vpop.f32.mrf.mxu0
    %954 = vmatprep.mubr.f32.mxu0 0.0
    %955 = vmatmul.mubr.f32.gmra.mxu0 %v723
    %v956 = vpop.f32.mrf.mxu0
    %v957 = vadd.f32 %v748, %v956
    %v958 = vpop.f32.mrf.mxu0
    %959 = vmatprep.mubr.f32.mxu0 0.0
    %960 = vmatmul.mubr.f32.gmra.mxu0 %v724
    %v961 = vpop.f32.mrf.mxu0
    %v962 = vadd.f32 %v748, %v961
    %v963 = vpop.f32.mrf.mxu0
    %964 = vmatprep.mubr.f32.mxu0 0.0
    %965 = vmatmul.mubr.f32.gmra.mxu0 %v725
    %v966 = vpop.f32.mrf.mxu0
    %v967 = vadd.f32 %v748, %v966
    %v968 = vpop.f32.mrf.mxu0
    %969 = vmatprep.mubr.f32.mxu0 0.0
    %970 = vmatmul.mubr.f32.gmra.mxu0 %v726
    %v971 = vpop.f32.mrf.mxu0
    %v972 = vadd.f32 %v748, %v971
    %v973 = vpop.f32.mrf.mxu0
    %974 = vdwg.mxu0
    %v975 = vmax.f32 %v817, 0.0
    %v976 = vmax.f32 %v822, 0.0
    %v977 = vmax.f32 %v827, 0.0
    %v978 = vmax.f32 %v832, 0.0
    %v979 = vmax.f32 %v837, 0.0
    %v980 = vmax.f32 %v842, 0.0
    %v981 = vmax.f32 %v847, 0.0
    %v982 = vmax.f32 %v852, 0.0
    %v983 = vmax.f32 %v857, 0.0
    %v984 = vmax.f32 %v862, 0.0
    %v985 = vmax.f32 %v867, 0.0
    %v986 = vmax.f32 %v872, 0.0
    %v987 = vmax.f32 %v877, 0.0
    %v988 = vmax.f32 %v882, 0.0
    %v989 = vmax.f32 %v887, 0.0
    %v990 = vmax.f32 %v892, 0.0
    %v991 = vmax.f32 %v897, 0.0
    %v992 = vmax.f32 %v902, 0.0
    %v993 = vmax.f32 %v907, 0.0
    %v994 = vmax.f32 %v912, 0.0
    %v995 = vmax.f32 %v917, 0.0
    %v996 = vmax.f32 %v922, 0.0
    %v997 = vmax.f32 %v927, 0.0
    %v998 = vmax.f32 %v932, 0.0
    %v999 = vmax.f32 %v937, 0.0
    %v1000 = vmax.f32 %v942, 0.0
    %v1001 = vmax.f32 %v947, 0.0
    %v1002 = vmax.f32 %v952, 0.0
    %v1003 = vmax.f32 %v957, 0.0
    %v1004 = vmax.f32 %v962, 0.0
    %v1005 = vmax.f32 %v967, 0.0
    %v1006 = vmax.f32 %v972, 0.0
    %v1007 = vld [vmem:[#allocation2] sm:$0xff]
    %v1008 = vld [vmem:[#allocation2 + $0x8] sm:$0xff]
    %v1009 = vld [vmem:[#allocation2 + $0x10] sm:$0xff]
    %v1010 = vld [vmem:[#allocation2 + $0x18] sm:$0xff]
    %v1011 = vld [vmem:[#allocation2 + $0x20] sm:$0xff]
    %v1012 = vld [vmem:[#allocation2 + $0x28] sm:$0xff]
    %v1013 = vld [vmem:[#allocation2 + $0x30] sm:$0xff]
    %v1014 = vld [vmem:[#allocation2 + $0x38] sm:$0xff]
    %v1015 = vld [vmem:[#allocation2 + $0x40] sm:$0xff]
    %v1016 = vld [vmem:[#allocation2 + $0x48] sm:$0xff]
    %v1017 = vld [vmem:[#allocation2 + $0x50] sm:$0xff]
    %v1018 = vld [vmem:[#allocation2 + $0x58] sm:$0xff]
    %v1019 = vld [vmem:[#allocation2 + $0x60] sm:$0xff]
    %v1020 = vld [vmem:[#allocation2 + $0x68] sm:$0xff]
    %v1021 = vld [vmem:[#allocation2 + $0x70] sm:$0xff]
    %v1022 = vld [vmem:[#allocation2 + $0x78] sm:$0xff]
    %v1023 = vld [vmem:[%s8] sm:$0x1]
    %v1025 = vlaneseq
    %v1026 = vshrl.u32 %v1025, 7
    %v1027 = vsub.s32 0, %v1026
    %v1028 = vrot.slane %v1023, %v1027
    %1030 = vmatprep.subr.mxu0 0.0
    %1031 = vmatpush1.msra.mxu0 %v1022
    %1032 = vmatprep.subr.mxu0 0.0
    %1033 = vmatpush1.msra.mxu0 %v1021
    %1034 = vmatprep.subr.mxu0 0.0
    %1035 = vmatpush1.msra.mxu0 %v1020
    %1036 = vmatprep.subr.mxu0 0.0
    %1037 = vmatpush1.msra.mxu0 %v1019
    %1038 = vmatprep.subr.mxu0 0.0
    %1039 = vmatpush1.msra.mxu0 %v1018
    %1040 = vmatprep.subr.mxu0 0.0
    %1041 = vmatpush1.msra.mxu0 %v1017
    %1042 = vmatprep.subr.mxu0 0.0
    %1043 = vmatpush1.msra.mxu0 %v1016
    %1044 = vmatprep.subr.mxu0 0.0
    %1045 = vmatpush1.msra.mxu0 %v1015
    %1046 = vmatprep.subr.mxu0 0.0
    %1047 = vmatpush1.msra.mxu0 %v1014
    %1048 = vmatprep.subr.mxu0 0.0
    %1049 = vmatpush1.msra.mxu0 %v1013
    %1050 = vmatprep.subr.mxu0 0.0
    %1051 = vmatpush1.msra.mxu0 %v1012
    %1052 = vmatprep.subr.mxu0 0.0
    %1053 = vmatpush1.msra.mxu0 %v1011
    %1054 = vmatprep.subr.mxu0 0.0
    %1055 = vmatpush1.msra.mxu0 %v1010
    %1056 = vmatprep.subr.mxu0 0.0
    %1057 = vmatpush1.msra.mxu0 %v1009
    %1058 = vmatprep.subr.mxu0 0.0
    %1059 = vmatpush1.msra.mxu0 %v1008
    %1060 = vmatprep.subr.mxu0 0.0
    %1061 = vmatpush1.msra.mxu0 %v1007
    %1062 = vmatprep.subr.mxu0 0.0
    %1063 = vmatpush2.msra.mxu0 0.0
    %1064 = vmatprep.subr.mxu0 0.0
    %1065 = vmatpush2.msra.mxu0 0.0
    %1066 = vmatprep.subr.mxu0 0.0
    %1067 = vmatpush2.msra.mxu0 0.0
    %1068 = vmatprep.subr.mxu0 0.0
    %1069 = vmatpush2.msra.mxu0 0.0
    %1070 = vmatprep.subr.mxu0 0.0
    %1071 = vmatpush2.msra.mxu0 0.0
    %1072 = vmatprep.subr.mxu0 0.0
    %1073 = vmatpush2.msra.mxu0 0.0
    %1074 = vmatprep.subr.mxu0 0.0
    %1075 = vmatpush2.msra.mxu0 0.0
    %1076 = vmatprep.subr.mxu0 0.0
    %1077 = vmatpush2.msra.mxu0 0.0
    %1078 = vmatprep.subr.mxu0 0.0
    %1079 = vmatpush2.msra.mxu0 0.0
    %1080 = vmatprep.subr.mxu0 0.0
    %1081 = vmatpush2.msra.mxu0 0.0
    %1082 = vmatprep.subr.mxu0 0.0
    %1083 = vmatpush2.msra.mxu0 0.0
    %1084 = vmatprep.subr.mxu0 0.0
    %1085 = vmatpush2.msra.mxu0 0.0
    %1086 = vmatprep.subr.mxu0 0.0
    %1087 = vmatpush2.msra.mxu0 0.0
    %1088 = vmatprep.subr.mxu0 0.0
    %1089 = vmatpush2.msra.mxu0 0.0
    %1090 = vmatprep.subr.mxu0 0.0
    %1091 = vmatpush2.msra.mxu0 0.0
    %1092 = vmatprep.subr.mxu0 0.0
    %1093 = vmatpush2.msra.mxu0 0.0
    %1094 = vmatprep.mubr.f32.mxu0 0.0
    %1095 = vmatmul.mubr.f32.gmra.mxu0 %v975
    %v1096 = vpop.f32.mrf.mxu0
    %v1097 = vadd.f32 %v1028, %v1096
    %v1098 = vpop.f32.mrf.mxu0
    %1099 = vmatprep.mubr.f32.mxu0 0.0
    %1100 = vmatmul.mubr.f32.gmra.mxu0 %v976
    %v1101 = vpop.f32.mrf.mxu0
    %v1102 = vadd.f32 %v1028, %v1101
    %v1103 = vpop.f32.mrf.mxu0
    %1104 = vmatprep.mubr.f32.mxu0 0.0
    %1105 = vmatmul.mubr.f32.gmra.mxu0 %v977
    %v1106 = vpop.f32.mrf.mxu0
    %v1107 = vadd.f32 %v1028, %v1106
    %v1108 = vpop.f32.mrf.mxu0
    %1109 = vmatprep.mubr.f32.mxu0 0.0
    %1110 = vmatmul.mubr.f32.gmra.mxu0 %v978
    %v1111 = vpop.f32.mrf.mxu0
    %v1112 = vadd.f32 %v1028, %v1111
    %v1113 = vpop.f32.mrf.mxu0
    %1114 = vmatprep.mubr.f32.mxu0 0.0
    %1115 = vmatmul.mubr.f32.gmra.mxu0 %v979
    %v1116 = vpop.f32.mrf.mxu0
    %v1117 = vadd.f32 %v1028, %v1116
    %v1118 = vpop.f32.mrf.mxu0
    %1119 = vmatprep.mubr.f32.mxu0 0.0
    %1120 = vmatmul.mubr.f32.gmra.mxu0 %v980
    %v1121 = vpop.f32.mrf.mxu0
    %v1122 = vadd.f32 %v1028, %v1121
    %v1123 = vpop.f32.mrf.mxu0
    %1124 = vmatprep.mubr.f32.mxu0 0.0
    %1125 = vmatmul.mubr.f32.gmra.mxu0 %v981
    %v1126 = vpop.f32.mrf.mxu0
    %v1127 = vadd.f32 %v1028, %v1126
    %v1128 = vpop.f32.mrf.mxu0
    %1129 = vmatprep.mubr.f32.mxu0 0.0
    %1130 = vmatmul.mubr.f32.gmra.mxu0 %v982
    %v1131 = vpop.f32.mrf.mxu0
    %v1132 = vadd.f32 %v1028, %v1131
    %v1133 = vpop.f32.mrf.mxu0
    %1134 = vmatprep.mubr.f32.mxu0 0.0
    %1135 = vmatmul.mubr.f32.gmra.mxu0 %v983
    %v1136 = vpop.f32.mrf.mxu0
    %v1137 = vadd.f32 %v1028, %v1136
    %v1138 = vpop.f32.mrf.mxu0
    %1139 = vmatprep.mubr.f32.mxu0 0.0
    %1140 = vmatmul.mubr.f32.gmra.mxu0 %v984
    %v1141 = vpop.f32.mrf.mxu0
    %v1142 = vadd.f32 %v1028, %v1141
    %v1143 = vpop.f32.mrf.mxu0
    %1144 = vmatprep.mubr.f32.mxu0 0.0
    %1145 = vmatmul.mubr.f32.gmra.mxu0 %v985
    %v1146 = vpop.f32.mrf.mxu0
    %v1147 = vadd.f32 %v1028, %v1146
    %v1148 = vpop.f32.mrf.mxu0
    %1149 = vmatprep.mubr.f32.mxu0 0.0
    %1150 = vmatmul.mubr.f32.gmra.mxu0 %v986
    %v1151 = vpop.f32.mrf.mxu0
    %v1152 = vadd.f32 %v1028, %v1151
    %v1153 = vpop.f32.mrf.mxu0
    %1154 = vmatprep.mubr.f32.mxu0 0.0
    %1155 = vmatmul.mubr.f32.gmra.mxu0 %v987
    %v1156 = vpop.f32.mrf.mxu0
    %v1157 = vadd.f32 %v1028, %v1156
    %v1158 = vpop.f32.mrf.mxu0
    %1159 = vmatprep.mubr.f32.mxu0 0.0
    %1160 = vmatmul.mubr.f32.gmra.mxu0 %v988
    %v1161 = vpop.f32.mrf.mxu0
    %v1162 = vadd.f32 %v1028, %v1161
    %v1163 = vpop.f32.mrf.mxu0
    %1164 = vmatprep.mubr.f32.mxu0 0.0
    %1165 = vmatmul.mubr.f32.gmra.mxu0 %v989
    %v1166 = vpop.f32.mrf.mxu0
    %v1167 = vadd.f32 %v1028, %v1166
    %v1168 = vpop.f32.mrf.mxu0
    %1169 = vmatprep.mubr.f32.mxu0 0.0
    %1170 = vmatmul.mubr.f32.gmra.mxu0 %v990
    %v1171 = vpop.f32.mrf.mxu0
    %v1172 = vadd.f32 %v1028, %v1171
    %v1173 = vpop.f32.mrf.mxu0
    %1174 = vmatprep.mubr.f32.mxu0 0.0
    %1175 = vmatmul.mubr.f32.gmra.mxu0 %v991
    %v1176 = vpop.f32.mrf.mxu0
    %v1177 = vadd.f32 %v1028, %v1176
    %v1178 = vpop.f32.mrf.mxu0
    %1179 = vmatprep.mubr.f32.mxu0 0.0
    %1180 = vmatmul.mubr.f32.gmra.mxu0 %v992
    %v1181 = vpop.f32.mrf.mxu0
    %v1182 = vadd.f32 %v1028, %v1181
    %v1183 = vpop.f32.mrf.mxu0
    %1184 = vmatprep.mubr.f32.mxu0 0.0
    %1185 = vmatmul.mubr.f32.gmra.mxu0 %v993
    %v1186 = vpop.f32.mrf.mxu0
    %v1187 = vadd.f32 %v1028, %v1186
    %v1188 = vpop.f32.mrf.mxu0
    %1189 = vmatprep.mubr.f32.mxu0 0.0
    %1190 = vmatmul.mubr.f32.gmra.mxu0 %v994
    %v1191 = vpop.f32.mrf.mxu0
    %v1192 = vadd.f32 %v1028, %v1191
    %v1193 = vpop.f32.mrf.mxu0
    %1194 = vmatprep.mubr.f32.mxu0 0.0
    %1195 = vmatmul.mubr.f32.gmra.mxu0 %v995
    %v1196 = vpop.f32.mrf.mxu0
    %v1197 = vadd.f32 %v1028, %v1196
    %v1198 = vpop.f32.mrf.mxu0
    %1199 = vmatprep.mubr.f32.mxu0 0.0
    %1200 = vmatmul.mubr.f32.gmra.mxu0 %v996
    %v1201 = vpop.f32.mrf.mxu0
    %v1202 = vadd.f32 %v1028, %v1201
    %v1203 = vpop.f32.mrf.mxu0
    %1204 = vmatprep.mubr.f32.mxu0 0.0
    %1205 = vmatmul.mubr.f32.gmra.mxu0 %v997
    %v1206 = vpop.f32.mrf.mxu0
    %v1207 = vadd.f32 %v1028, %v1206
    %v1208 = vpop.f32.mrf.mxu0
    %1209 = vmatprep.mubr.f32.mxu0 0.0
    %1210 = vmatmul.mubr.f32.gmra.mxu0 %v998
    %v1211 = vpop.f32.mrf.mxu0
    %v1212 = vadd.f32 %v1028, %v1211
    %v1213 = vpop.f32.mrf.mxu0
    %1214 = vmatprep.mubr.f32.mxu0 0.0
    %1215 = vmatmul.mubr.f32.gmra.mxu0 %v999
    %v1216 = vpop.f32.mrf.mxu0
    %v1217 = vadd.f32 %v1028, %v1216
    %v1218 = vpop.f32.mrf.mxu0
    %1219 = vmatprep.mubr.f32.mxu0 0.0
    %1220 = vmatmul.mubr.f32.gmra.mxu0 %v1000
    %v1221 = vpop.f32.mrf.mxu0
    %v1222 = vadd.f32 %v1028, %v1221
    %v1223 = vpop.f32.mrf.mxu0
    %1224 = vmatprep.mubr.f32.mxu0 0.0
    %1225 = vmatmul.mubr.f32.gmra.mxu0 %v1001
    %v1226 = vpop.f32.mrf.mxu0
    %v1227 = vadd.f32 %v1028, %v1226
    %v1228 = vpop.f32.mrf.mxu0
    %1229 = vmatprep.mubr.f32.mxu0 0.0
    %1230 = vmatmul.mubr.f32.gmra.mxu0 %v1002
    %v1231 = vpop.f32.mrf.mxu0
    %v1232 = vadd.f32 %v1028, %v1231
    %v1233 = vpop.f32.mrf.mxu0
    %1234 = vmatprep.mubr.f32.mxu0 0.0
    %1235 = vmatmul.mubr.f32.gmra.mxu0 %v1003
    %v1236 = vpop.f32.mrf.mxu0
    %v1237 = vadd.f32 %v1028, %v1236
    %v1238 = vpop.f32.mrf.mxu0
    %1239 = vmatprep.mubr.f32.mxu0 0.0
    %1240 = vmatmul.mubr.f32.gmra.mxu0 %v1004
    %v1241 = vpop.f32.mrf.mxu0
    %v1242 = vadd.f32 %v1028, %v1241
    %v1243 = vpop.f32.mrf.mxu0
    %1244 = vmatprep.mubr.f32.mxu0 0.0
    %1245 = vmatmul.mubr.f32.gmra.mxu0 %v1005
    %v1246 = vpop.f32.mrf.mxu0
    %v1247 = vadd.f32 %v1028, %v1246
    %v1248 = vpop.f32.mrf.mxu0
    %1249 = vmatprep.mubr.f32.mxu0 0.0
    %1250 = vmatmul.mubr.f32.gmra.mxu0 %v1006
    %v1251 = vpop.f32.mrf.mxu0
    %v1252 = vadd.f32 %v1028, %v1251
    %v1253 = vpop.f32.mrf.mxu0
    %1254 = vdwg.mxu0
    %v1255 = vtanh.pop %v1097
    %v1256 = vtanh.pop %v1102
    %v1257 = vtanh.pop %v1107
    %v1258 = vtanh.pop %v1112
    %v1259 = vtanh.pop %v1117
    %v1260 = vtanh.pop %v1122
    %v1261 = vtanh.pop %v1127
    %v1262 = vtanh.pop %v1132
    %v1263 = vtanh.pop %v1137
    %v1264 = vtanh.pop %v1142
    %v1265 = vtanh.pop %v1147
    %v1266 = vtanh.pop %v1152
    %v1267 = vtanh.pop %v1157
    %v1268 = vtanh.pop %v1162
    %v1269 = vtanh.pop %v1167
    %v1270 = vtanh.pop %v1172
    %v1271 = vtanh.pop %v1177
    %v1272 = vtanh.pop %v1182
    %v1273 = vtanh.pop %v1187
    %v1274 = vtanh.pop %v1192
    %v1275 = vtanh.pop %v1197
    %v1276 = vtanh.pop %v1202
    %v1277 = vtanh.pop %v1207
    %v1278 = vtanh.pop %v1212
    %v1279 = vtanh.pop %v1217
    %v1280 = vtanh.pop %v1222
    %v1281 = vtanh.pop %v1227
    %v1282 = vtanh.pop %v1232
    %v1283 = vtanh.pop %v1237
    %v1284 = vtanh.pop %v1242
    %v1285 = vtanh.pop %v1247
    %v1286 = vtanh.pop %v1252
    %1287 = vst [vmem:[#allocation5] sm:$0xff] %v695
    %1288 = vst [vmem:[#allocation5 + $0x8] sm:$0xff] %v696
    %1289 = vst [vmem:[#allocation5 + $0x10] sm:$0xff] %v697
    %1290 = vst [vmem:[#allocation5 + $0x18] sm:$0xff] %v698
    %1291 = vst [vmem:[#allocation5 + $0x20] sm:$0xff] %v699
    %1292 = vst [vmem:[#allocation5 + $0x28] sm:$0xff] %v700
    %1293 = vst [vmem:[#allocation5 + $0x30] sm:$0xff] %v701
    %1294 = vst [vmem:[#allocation5 + $0x38] sm:$0xff] %v702
    %1295 = vst [vmem:[#allocation5 + $0x40] sm:$0xff] %v703
    %1296 = vst [vmem:[#allocation5 + $0x48] sm:$0xff] %v704
    %1297 = vst [vmem:[#allocation5 + $0x50] sm:$0xff] %v705
    %1298 = vst [vmem:[#allocation5 + $0x58] sm:$0xff] %v706
    %1299 = vst [vmem:[#allocation5 + $0x60] sm:$0xff] %v707
    %1300 = vst [vmem:[#allocation5 + $0x68] sm:$0xff] %v708
    %1301 = vst [vmem:[#allocation5 + $0x70] sm:$0xff] %v709
    %1302 = vst [vmem:[#allocation5 + $0x78] sm:$0xff] %v710
    %1303 = vst [vmem:[#allocation5 + $0x80] sm:$0xff] %v711
    %1304 = vst [vmem:[#allocation5 + $0x88] sm:$0xff] %v712
    %1305 = vst [vmem:[#allocation5 + $0x90] sm:$0xff] %v713
    %1306 = vst [vmem:[#allocation5 + $0x98] sm:$0xff] %v714
    %1307 = vst [vmem:[#allocation5 + $0xa0] sm:$0xff] %v715
    %1308 = vst [vmem:[#allocation5 + $0xa8] sm:$0xff] %v716
    %1309 = vst [vmem:[#allocation5 + $0xb0] sm:$0xff] %v717
    %1310 = vst [vmem:[#allocation5 + $0xb8] sm:$0xff] %v718
    %1311 = vst [vmem:[#allocation5 + $0xc0] sm:$0xff] %v719
    %1312 = vst [vmem:[#allocation5 + $0xc8] sm:$0xff] %v720
    %1313 = vst [vmem:[#allocation5 + $0xd0] sm:$0xff] %v721
    %1314 = vst [vmem:[#allocation5 + $0xd8] sm:$0xff] %v722
    %1315 = vst [vmem:[#allocation5 + $0xe0] sm:$0xff] %v723
    %1316 = vst [vmem:[#allocation5 + $0xe8] sm:$0xff] %v724
    %1317 = vst [vmem:[#allocation5 + $0xf0] sm:$0xff] %v725
    %1318 = vst [vmem:[#allocation5 + $0xf8] sm:$0xff] %v726
    %1319 = vst [vmem:[#allocation6] sm:$0xff] %v1255
    %1320 = vst [vmem:[#allocation6 + $0x8] sm:$0xff] %v1256
    %1321 = vst [vmem:[#allocation6 + $0x10] sm:$0xff] %v1257
    %1322 = vst [vmem:[#allocation6 + $0x18] sm:$0xff] %v1258
    %1323 = vst [vmem:[#allocation6 + $0x20] sm:$0xff] %v1259
    %1324 = vst [vmem:[#allocation6 + $0x28] sm:$0xff] %v1260
    %1325 = vst [vmem:[#allocation6 + $0x30] sm:$0xff] %v1261
    %1326 = vst [vmem:[#allocation6 + $0x38] sm:$0xff] %v1262
    %1327 = vst [vmem:[#allocation6 + $0x40] sm:$0xff] %v1263
    %1328 = vst [vmem:[#allocation6 + $0x48] sm:$0xff] %v1264
    %1329 = vst [vmem:[#allocation6 + $0x50] sm:$0xff] %v1265
    %1330 = vst [vmem:[#allocation6 + $0x58] sm:$0xff] %v1266
    %1331 = vst [vmem:[#allocation6 + $0x60] sm:$0xff] %v1267
    %1332 = vst [vmem:[#allocation6 + $0x68] sm:$0xff] %v1268
    %1333 = vst [vmem:[#allocation6 + $0x70] sm:$0xff] %v1269
    %1334 = vst [vmem:[#allocation6 + $0x78] sm:$0xff] %v1270
    %1335 = vst [vmem:[#allocation6 + $0x80] sm:$0xff] %v1271
    %1336 = vst [vmem:[#allocation6 + $0x88] sm:$0xff] %v1272
    %1337 = vst [vmem:[#allocation6 + $0x90] sm:$0xff] %v1273
    %1338 = vst [vmem:[#allocation6 + $0x98] sm:$0xff] %v1274
    %1339 = vst [vmem:[#allocation6 + $0xa0] sm:$0xff] %v1275
    %1340 = vst [vmem:[#allocation6 + $0xa8] sm:$0xff] %v1276
    %1341 = vst [vmem:[#allocation6 + $0xb0] sm:$0xff] %v1277
    %1342 = vst [vmem:[#allocation6 + $0xb8] sm:$0xff] %v1278
    %1343 = vst [vmem:[#allocation6 + $0xc0] sm:$0xff] %v1279
    %1344 = vst [vmem:[#allocation6 + $0xc8] sm:$0xff] %v1280
    %1345 = vst [vmem:[#allocation6 + $0xd0] sm:$0xff] %v1281
    %1346 = vst [vmem:[#allocation6 + $0xd8] sm:$0xff] %v1282
    %1347 = vst [vmem:[#allocation6 + $0xe0] sm:$0xff] %v1283
    %1348 = vst [vmem:[#allocation6 + $0xe8] sm:$0xff] %v1284
    %1349 = vst [vmem:[#allocation6 + $0xf0] sm:$0xff] %v1285
    %1350 = vst [vmem:[#allocation6 + $0xf8] sm:$0xff] %v1286
    // Predicated region
    $region42: #{tpu_custom_call.1} parent=1 // pred_check
      _
    $region43: #{tpu_custom_call.1} parent=1 // pred_check_branch
      %1352 = sbr.rel (0) target = $region45
    $region44: #{tpu_custom_call.1} parent=1 // pred_region
      %s1354 = ssub.s32 4096, 4096
      %1355 = vsyncadd [#allocation4], %s1354
      %s1356 = sshll.u32 [#allocation5], 4
      %s1357 = int_to_ptr.vmem [resolvable:$true] %s1356
      %1362 = dma.vmem_to_hbm [thread:$0]  %s1357, 4096, %s9, [#allocation4], 128, 128, 8
    $region45: #{tpu_custom_call.1} parent=1 // pred_fallthru
      _
    // Predicated region
    $region46: #{tpu_custom_call.1} parent=1 // pred_check
      _
    $region47: #{tpu_custom_call.1} parent=1 // pred_check_branch
      %1364 = sbr.rel (0) target = $region49
    $region48: #{tpu_custom_call.1} parent=1 // pred_region
      %s1366 = ssub.s32 4096, 4096
      %1367 = vsyncadd [#allocation7], %s1366
      %s1368 = sshll.u32 [#allocation6], 4
      %s1369 = int_to_ptr.vmem [resolvable:$true] %s1368
      %1374 = dma.vmem_to_hbm [thread:$0]  %s1369, 4096, %s10, [#allocation7], 128, 128, 8
    $region49: #{tpu_custom_call.1} parent=1 // pred_fallthru
      _
    // Predicated region
    $region50: #{tpu_custom_call.1} parent=1 // pred_check
      _
    $region51: #{tpu_custom_call.1} parent=1 // pred_check_branch
      %1376 = sbr.rel (0) target = $region53
    $region52: #{tpu_custom_call.1} parent=1 // pred_region
      %1377 = dma.done [#allocation4], 4096
    $region53: #{tpu_custom_call.1} parent=1 // pred_fallthru
      _
    // Predicated region
    $region54: #{tpu_custom_call.1} parent=1 // pred_check
      _
    $region55: #{tpu_custom_call.1} parent=1 // pred_check_branch
      %1379 = sbr.rel (0) target = $region57
    $region56: #{tpu_custom_call.1} parent=1 // pred_region
      %1380 = dma.done [#allocation7], 4096
    $region57: #{tpu_custom_call.1} parent=1 // pred_fallthru
      _
    %1381 = vsyncpa [#allocation3], 1
    %1382 = vsyncpa [#allocation4], 1
    %1383 = vsyncpa [#allocation7], 1

</llo_original>
